<compile_context>
chip_gen: v6e
topology: v6e:2x2x1
jax: 0.10.0
libtpu: 0.0.40
codegen_flags: <defaults>
</compile_context>

<pallas_src>
import jax
import jax.numpy as jnp
from jax import lax
from jax.experimental import pallas as pl
from jax.experimental.pallas import tpu as pltpu

# ---- model hyperparameters (small, consistent with the module) --------------
B = 2          # batch
S = 8          # sequence length
D = 32         # d_model
NHEAD = 4      # number of attention heads
HD = D // NHEAD
FF = 64        # dim_feedforward
EPS = 1e-5     # nn.LayerNorm default eps


def encoder_kernel(x_ref,
                   wqkv_ref, bqkv_ref, wo_ref, bo_ref,
                   g1_ref, be1_ref,
                   w1_ref, b1_ref, w2_ref, b2_ref,
                   g2_ref, be2_ref,
                   o_ref):
    x = x_ref[...].astype(jnp.float32)            # (B, S, D)
    x2 = x.reshape(B * S, D)                      # (16, 32) flattened tokens

    # ---------------- fused Q/K/V projection (one MXU matmul) ----------------
    qkv = jnp.dot(x2, wqkv_ref[...],
                  preferred_element_type=jnp.float32) + bqkv_ref[...]   # (16, 96)
    q = qkv[:, 0 * D:1 * D].reshape(B, S, D)
    k = qkv[:, 1 * D:2 * D].reshape(B, S, D)
    v = qkv[:, 2 * D:3 * D].reshape(B, S, D)

    # ---------------- multi-head attention, no lane slicing / concat ---------
    # Disjoint per-head lane masks: head h owns lanes [h*HD, (h+1)*HD).
    lane = lax.broadcasted_iota(jnp.int32, (NHEAD, D), 1)
    head = lax.broadcasted_iota(jnp.int32, (NHEAD, D), 0)
    head_mask = jnp.logical_and(lane >= head * HD,
                                lane < (head + 1) * HD).astype(jnp.float32)  # (NHEAD, D)
    mask4 = head_mask[None, :, None, :]                                      # (1, NHEAD, 1, D)

    # Masked q / v carry only their head's lanes; k is broadcast per head.
    qh = (q[:, None, :, :] * mask4).reshape(B * NHEAD, S, D)     # (8, 8, 32)
    vh = (v[:, None, :, :] * mask4).reshape(B * NHEAD, S, D)     # (8, 8, 32)
    kb = jnp.broadcast_to(k[:, None, :, :],
                          (B, NHEAD, S, D)).reshape(B * NHEAD, S, D)

    scale = 1.0 / (HD ** 0.5)
    # Contracting over all D lanes with q masked per head == per-head dot.
    scores = jnp.einsum('nqd,nkd->nqk', qh, kb,
                        preferred_element_type=jnp.float32) * scale          # (8, 8, 8)
    scores = scores - jnp.max(scores, axis=-1, keepdims=True)
    p = jnp.exp(scores)
    p = p * pl.reciprocal(jnp.sum(p, axis=-1, keepdims=True), approx=True)

    ctx = jnp.einsum('nqk,nkd->nqd', p, vh,
                     preferred_element_type=jnp.float32)                     # (8, 8, 32)
    # Heads live on disjoint lanes, so summing over the head axis is exactly
    # the concatenation of per-head outputs.
    ctx = ctx.reshape(B, NHEAD, S, D).sum(axis=1).reshape(B * S, D)          # (16, 32)

    attn_out = jnp.dot(ctx, wo_ref[...],
                       preferred_element_type=jnp.float32) + bo_ref[...]

    # ---------------- residual + LayerNorm 1 (dropout = identity) ------------
    x1 = x2 + attn_out
    mu1 = jnp.mean(x1, axis=-1, keepdims=True)
    var1 = jnp.mean((x1 - mu1) ** 2, axis=-1, keepdims=True)
    y1 = (x1 - mu1) * lax.rsqrt(var1 + EPS) * g1_ref[...] + be1_ref[...]

    # ---------------- position-wise feed-forward ------------------------------
    h1 = jnp.dot(y1, w1_ref[...], preferred_element_type=jnp.float32) + b1_ref[...]
    h1 = jnp.maximum(h1, 0.0)                                # ReLU
    ff = jnp.dot(h1, w2_ref[...], preferred_element_type=jnp.float32) + b2_ref[...]

    # ---------------- residual + LayerNorm 2 (dropout = identity) ------------
    z = y1 + ff
    mu2 = jnp.mean(z, axis=-1, keepdims=True)
    var2 = jnp.mean((z - mu2) ** 2, axis=-1, keepdims=True)
    y2 = (z - mu2) * lax.rsqrt(var2 + EPS) * g2_ref[...] + be2_ref[...]

    o_ref[...] = y2.reshape(B, S, D).astype(o_ref.dtype)


def transformer_encoder(x, params):
    """x: (B, S, D) float32; params: dict of weights (see init_params)."""
    # Pack Q/K/V into a single (D, 3D) weight / (1, 3D) bias in the wrapper.
    w_qkv = jnp.concatenate([params["wq"], params["wk"], params["wv"]], axis=1)
    b_qkv = jnp.concatenate([params["bq"], params["bk"], params["bv"]], axis=1)

    inputs = (x, w_qkv, b_qkv,
              params["wo"], params["bo"],
              params["g1"], params["be1"],
              params["w1"], params["b1"], params["w2"], params["b2"],
              params["g2"], params["be2"])

    vmem = pl.BlockSpec(memory_space=pltpu.MemorySpace.VMEM)
    return pl.pallas_call(
        encoder_kernel,
        out_shape=jax.ShapeDtypeStruct(x.shape, x.dtype),
        in_specs=[vmem] * len(inputs),
        out_specs=vmem,
    )(*inputs)


def init_params(key):
    """Deterministic synthetic parameters (weights stored as (in, out))."""
    ks = jax.random.split(key, 8)
    sd = 0.05
    params = {
        "wq": jax.random.normal(ks[0], (D, D), jnp.float32) * sd,
        "bq": jax.random.normal(ks[1], (1, D), jnp.float32) * sd,
        "wk": jax.random.normal(ks[2], (D, D), jnp.float32) * sd,
        "bk": jax.random.normal(ks[3], (1, D), jnp.float32) * sd,
        "wv": jax.random.normal(ks[4], (D, D), jnp.float32) * sd,
        "bv": jax.random.normal(ks[5], (1, D), jnp.float32) * sd,
        "wo": jax.random.normal(ks[6], (D, D), jnp.float32) * sd,
        "bo": jax.random.normal(ks[7], (1, D), jnp.float32) * sd,
        "g1": jnp.ones((1, D), jnp.float32),
        "be1": jnp.zeros((1, D), jnp.float32),
        "w1": jax.random.normal(jax.random.PRNGKey(101), (D, FF), jnp.float32) * sd,
        "b1": jax.random.normal(jax.random.PRNGKey(102), (1, FF), jnp.float32) * sd,
        "w2": jax.random.normal(jax.random.PRNGKey(103), (FF, D), jnp.float32) * sd,
        "b2": jax.random.normal(jax.random.PRNGKey(104), (1, D), jnp.float32) * sd,
        "g2": jnp.ones((1, D), jnp.float32),
        "be2": jnp.zeros((1, D), jnp.float32),
    }
    return params


def reference_encoder(x, p):
    """Pure-JAX reference of the same forward pass (sanity check)."""
    def ln(z, g, b):
        mu = jnp.mean(z, -1, keepdims=True)
        var = jnp.mean((z - mu) ** 2, -1, keepdims=True)
        return (z - mu) * lax.rsqrt(var + EPS) * g + b

    q = x @ p["wq"] + p["bq"]
    k = x @ p["wk"] + p["bk"]
    v = x @ p["wv"] + p["bv"]
    qh = q.reshape(B, S, NHEAD, HD).transpose(0, 2, 1, 3)
    kh = k.reshape(B, S, NHEAD, HD).transpose(0, 2, 1, 3)
    vh = v.reshape(B, S, NHEAD, HD).transpose(0, 2, 1, 3)
    scores = jnp.einsum("bhqd,bhkd->bhqk", qh, kh) / jnp.sqrt(jnp.float32(HD))
    attn = jax.nn.softmax(scores, axis=-1)
    ctx = jnp.einsum("bhqk,bhkd->bhqd", attn, vh).transpose(0, 2, 1, 3).reshape(B, S, D)
    attn_out = ctx @ p["wo"] + p["bo"]
    x1 = ln(x + attn_out, p["g1"], p["be1"])
    ff = jnp.maximum(x1 @ p["w1"] + p["b1"], 0.0) @ p["w2"] + p["b2"]
    return ln(x1 + ff, p["g2"], p["be2"])


if __name__ == "__main__":
    key = jax.random.PRNGKey(0)
    kx, kp = jax.random.split(key)
    x = jax.random.normal(kx, (B, S, D), jnp.float32)
    params = init_params(kp)

    out = transformer_encoder(x, params)
    out = jax.block_until_ready(out)

    ref = reference_encoder(x, params)
    assert out.shape == (B, S, D)
    # Tolerance covers the approximate (EUP) reciprocal in the softmax.
    assert jnp.allclose(out, ref, atol=2e-3, rtol=2e-3), "mismatch vs JAX reference"

    print("KERNEL_OK")
</pallas_src>

<mosaic_0001>
module attributes {stable_mosaic.version = 11 : i64} {
  func.func @encoder_kernel(%arg0: memref<2x8x32xf32, #tpu.memory_space<vmem>>, %arg1: memref<32x96xf32, #tpu.memory_space<vmem>>, %arg2: memref<1x96xf32, #tpu.memory_space<vmem>>, %arg3: memref<32x32xf32, #tpu.memory_space<vmem>>, %arg4: memref<1x32xf32, #tpu.memory_space<vmem>>, %arg5: memref<1x32xf32, #tpu.memory_space<vmem>>, %arg6: memref<1x32xf32, #tpu.memory_space<vmem>>, %arg7: memref<32x64xf32, #tpu.memory_space<vmem>>, %arg8: memref<1x64xf32, #tpu.memory_space<vmem>>, %arg9: memref<64x32xf32, #tpu.memory_space<vmem>>, %arg10: memref<1x32xf32, #tpu.memory_space<vmem>>, %arg11: memref<1x32xf32, #tpu.memory_space<vmem>>, %arg12: memref<1x32xf32, #tpu.memory_space<vmem>>, %arg13: memref<2x8x32xf32, #tpu.memory_space<vmem>>) attributes {dimension_semantics = [], scalar_prefetch = 0 : i64, scratch_operands = 0 : i64, tpu.core_type = #tpu.core_type<tc>} {
    %c0 = arith.constant 0 : index
    %c0_0 = arith.constant 0 : index
    %c0_1 = arith.constant 0 : index
    %0 = vector.load %arg0[%c0, %c0_0, %c0_1] : memref<2x8x32xf32, #tpu.memory_space<vmem>>, vector<2x8x32xf32>
    %1 = vector.shape_cast %0 : vector<2x8x32xf32> to vector<16x32xf32>
    %c0_2 = arith.constant 0 : index
    %c0_3 = arith.constant 0 : index
    %2 = vector.load %arg1[%c0_2, %c0_3] : memref<32x96xf32, #tpu.memory_space<vmem>>, vector<32x96xf32>
    %cst = arith.constant dense<0.000000e+00> : vector<16x96xf32>
    %3 = tpu.matmul %1, %2, %cst {dimension_numbers = #tpu.dot_dimension_numbers<[1], [0], [0], [1], [0, 0, 1, 1], [], []>} : vector<16x32xf32>, vector<32x96xf32>, vector<16x96xf32> -> vector<16x96xf32>
    %c0_4 = arith.constant 0 : index
    %c0_5 = arith.constant 0 : index
    %4 = vector.load %arg2[%c0_4, %c0_5] : memref<1x96xf32, #tpu.memory_space<vmem>>, vector<1x96xf32>
    %5 = vector.broadcast %4 : vector<1x96xf32> to vector<16x96xf32>
    %6 = arith.addf %3, %5 : vector<16x96xf32>
    %7 = vector.extract_strided_slice %6 {offsets = [0, 0], sizes = [16, 32], strides = [1, 1]} : vector<16x96xf32> to vector<16x32xf32>
    %8 = vector.shape_cast %7 : vector<16x32xf32> to vector<2x8x32xf32>
    %9 = vector.extract_strided_slice %6 {offsets = [0, 32], sizes = [16, 32], strides = [1, 1]} : vector<16x96xf32> to vector<16x32xf32>
    %10 = vector.shape_cast %9 : vector<16x32xf32> to vector<2x8x32xf32>
    %11 = vector.extract_strided_slice %6 {offsets = [0, 64], sizes = [16, 32], strides = [1, 1]} : vector<16x96xf32> to vector<16x32xf32>
    %12 = vector.shape_cast %11 : vector<16x32xf32> to vector<2x8x32xf32>
    %13 = tpu.iota {dimensions = array<i32: 1>} : vector<4x32xi32>
    %14 = tpu.iota {dimensions = array<i32: 0>} : vector<4x32xi32>
    %c8_i32 = arith.constant 8 : i32
    %15 = vector.broadcast %c8_i32 : i32 to vector<4x32xi32>
    %16 = arith.muli %14, %15 : vector<4x32xi32>
    %17 = arith.cmpi sge, %13, %16 : vector<4x32xi32>
    %c1_i32 = arith.constant 1 : i32
    %18 = vector.broadcast %c1_i32 : i32 to vector<4x32xi32>
    %19 = arith.addi %14, %18 : vector<4x32xi32>
    %c8_i32_6 = arith.constant 8 : i32
    %20 = vector.broadcast %c8_i32_6 : i32 to vector<4x32xi32>
    %21 = arith.muli %19, %20 : vector<4x32xi32>
    %22 = arith.cmpi slt, %13, %21 : vector<4x32xi32>
    %23 = arith.andi %17, %22 : vector<4x32xi1>
    %24 = arith.extui %23 : vector<4x32xi1> to vector<4x32xi32>
    %25 = arith.sitofp %24 : vector<4x32xi32> to vector<4x32xf32>
    %26 = vector.shape_cast %25 : vector<4x32xf32> to vector<1x4x1x32xf32>
    %27 = vector.shape_cast %8 : vector<2x8x32xf32> to vector<2x1x8x32xf32>
    %28 = vector.broadcast %27 : vector<2x1x8x32xf32> to vector<2x4x8x32xf32>
    %29 = vector.broadcast %26 : vector<1x4x1x32xf32> to vector<2x4x8x32xf32>
    %30 = arith.mulf %28, %29 : vector<2x4x8x32xf32>
    %31 = vector.shape_cast %30 : vector<2x4x8x32xf32> to vector<8x8x32xf32>
    %32 = vector.shape_cast %12 : vector<2x8x32xf32> to vector<2x1x8x32xf32>
    %33 = vector.broadcast %32 : vector<2x1x8x32xf32> to vector<2x4x8x32xf32>
    %34 = vector.broadcast %26 : vector<1x4x1x32xf32> to vector<2x4x8x32xf32>
    %35 = arith.mulf %33, %34 : vector<2x4x8x32xf32>
    %36 = vector.shape_cast %35 : vector<2x4x8x32xf32> to vector<8x8x32xf32>
    %37 = vector.shape_cast %10 : vector<2x8x32xf32> to vector<2x1x8x32xf32>
    %38 = vector.shape_cast %37 : vector<2x1x8x32xf32> to vector<2x1x8x32xf32>
    %39 = vector.broadcast %38 : vector<2x1x8x32xf32> to vector<2x4x8x32xf32>
    %40 = vector.shape_cast %39 : vector<2x4x8x32xf32> to vector<8x8x32xf32>
    "tpu.trace_start"() <{level = 10 : i32, message = "nqd,nkd->nqk"}> : () -> ()
    %cst_7 = arith.constant dense<0.000000e+00> : vector<8x8x8xf32>
    %41 = tpu.matmul %31, %40, %cst_7 {dimension_numbers = #tpu.dot_dimension_numbers<[2], [2], [1], [1], [0, 0, 0, 1, 1, 1], [0], [0]>} : vector<8x8x32xf32>, vector<8x8x32xf32>, vector<8x8x8xf32> -> vector<8x8x8xf32>
    "tpu.trace_stop"() : () -> ()
    %cst_8 = arith.constant 0.353553385 : f32
    %42 = vector.broadcast %cst_8 : f32 to vector<8x8x8xf32>
    %43 = arith.mulf %41, %42 : vector<8x8x8xf32>
    %cst_9 = arith.constant dense<0xFF800000> : vector<8x8xf32>
    %44 = vector.multi_reduction <maximumf>, %43, %cst_9 [2] : vector<8x8x8xf32> to vector<8x8xf32>
    %45 = vector.shape_cast %44 : vector<8x8xf32> to vector<8x8x1xf32>
    %46 = vector.broadcast %45 : vector<8x8x1xf32> to vector<8x8x8xf32>
    %47 = arith.subf %43, %46 : vector<8x8x8xf32>
    %48 = math.exp %47 : vector<8x8x8xf32>
    %cst_10 = arith.constant dense<0.000000e+00> : vector<8x8xf32>
    %49 = vector.multi_reduction <add>, %48, %cst_10 [2] : vector<8x8x8xf32> to vector<8x8xf32>
    %50 = vector.shape_cast %49 : vector<8x8xf32> to vector<8x8x1xf32>
    %51 = tpu.reciprocal %50 {approx = true} : vector<8x8x1xf32> -> vector<8x8x1xf32>
    %52 = vector.broadcast %51 : vector<8x8x1xf32> to vector<8x8x8xf32>
    %53 = arith.mulf %48, %52 : vector<8x8x8xf32>
    "tpu.trace_start"() <{level = 10 : i32, message = "nqk,nkd->nqd"}> : () -> ()
    %cst_11 = arith.constant dense<0.000000e+00> : vector<8x8x32xf32>
    %54 = tpu.matmul %53, %36, %cst_11 {dimension_numbers = #tpu.dot_dimension_numbers<[2], [1], [1], [2], [0, 0, 0, 1, 1, 2], [0], [0]>} : vector<8x8x8xf32>, vector<8x8x32xf32>, vector<8x8x32xf32> -> vector<8x8x32xf32>
    "tpu.trace_stop"() : () -> ()
    %55 = vector.shape_cast %54 : vector<8x8x32xf32> to vector<2x4x8x32xf32>
    %cst_12 = arith.constant dense<0.000000e+00> : vector<2x8x32xf32>
    %56 = vector.multi_reduction <add>, %55, %cst_12 [1] : vector<2x4x8x32xf32> to vector<2x8x32xf32>
    %57 = vector.shape_cast %56 : vector<2x8x32xf32> to vector<16x32xf32>
    %c0_13 = arith.constant 0 : index
    %c0_14 = arith.constant 0 : index
    %58 = vector.load %arg3[%c0_13, %c0_14] : memref<32x32xf32, #tpu.memory_space<vmem>>, vector<32x32xf32>
    %cst_15 = arith.constant dense<0.000000e+00> : vector<16x32xf32>
    %59 = tpu.matmul %57, %58, %cst_15 {dimension_numbers = #tpu.dot_dimension_numbers<[1], [0], [0], [1], [0, 0, 1, 1], [], []>} : vector<16x32xf32>, vector<32x32xf32>, vector<16x32xf32> -> vector<16x32xf32>
    %c0_16 = arith.constant 0 : index
    %c0_17 = arith.constant 0 : index
    %60 = vector.load %arg4[%c0_16, %c0_17] : memref<1x32xf32, #tpu.memory_space<vmem>>, vector<1x32xf32>
    %61 = vector.broadcast %60 : vector<1x32xf32> to vector<16x32xf32>
    %62 = arith.addf %59, %61 : vector<16x32xf32>
    %63 = arith.addf %1, %62 : vector<16x32xf32>
    %cst_18 = arith.constant dense<0.000000e+00> : vector<16xf32>
    %64 = vector.multi_reduction <add>, %63, %cst_18 [1] : vector<16x32xf32> to vector<16xf32>
    %65 = vector.shape_cast %64 : vector<16xf32> to vector<16x1xf32>
    %cst_19 = arith.constant 3.200000e+01 : f32
    %66 = vector.broadcast %cst_19 : f32 to vector<16x1xf32>
    %67 = arith.divf %65, %66 : vector<16x1xf32>
    %68 = vector.broadcast %67 : vector<16x1xf32> to vector<16x32xf32>
    %69 = arith.subf %63, %68 : vector<16x32xf32>
    %70 = arith.mulf %69, %69 : vector<16x32xf32>
    %cst_20 = arith.constant dense<0.000000e+00> : vector<16xf32>
    %71 = vector.multi_reduction <add>, %70, %cst_20 [1] : vector<16x32xf32> to vector<16xf32>
    %72 = vector.shape_cast %71 : vector<16xf32> to vector<16x1xf32>
    %cst_21 = arith.constant 3.200000e+01 : f32
    %73 = vector.broadcast %cst_21 : f32 to vector<16x1xf32>
    %74 = arith.divf %72, %73 : vector<16x1xf32>
    %75 = vector.broadcast %67 : vector<16x1xf32> to vector<16x32xf32>
    %76 = arith.subf %63, %75 : vector<16x32xf32>
    %cst_22 = arith.constant 9.99999974E-6 : f32
    %77 = vector.broadcast %cst_22 : f32 to vector<16x1xf32>
    %78 = arith.addf %74, %77 : vector<16x1xf32>
    %79 = math.rsqrt %78 : vector<16x1xf32>
    %80 = vector.broadcast %79 : vector<16x1xf32> to vector<16x32xf32>
    %81 = arith.mulf %76, %80 : vector<16x32xf32>
    %c0_23 = arith.constant 0 : index
    %c0_24 = arith.constant 0 : index
    %82 = vector.load %arg5[%c0_23, %c0_24] : memref<1x32xf32, #tpu.memory_space<vmem>>, vector<1x32xf32>
    %83 = vector.broadcast %82 : vector<1x32xf32> to vector<16x32xf32>
    %84 = arith.mulf %81, %83 : vector<16x32xf32>
    %c0_25 = arith.constant 0 : index
    %c0_26 = arith.constant 0 : index
    %85 = vector.load %arg6[%c0_25, %c0_26] : memref<1x32xf32, #tpu.memory_space<vmem>>, vector<1x32xf32>
    %86 = vector.broadcast %85 : vector<1x32xf32> to vector<16x32xf32>
    %87 = arith.addf %84, %86 : vector<16x32xf32>
    %c0_27 = arith.constant 0 : index
    %c0_28 = arith.constant 0 : index
    %88 = vector.load %arg7[%c0_27, %c0_28] : memref<32x64xf32, #tpu.memory_space<vmem>>, vector<32x64xf32>
    %cst_29 = arith.constant dense<0.000000e+00> : vector<16x64xf32>
    %89 = tpu.matmul %87, %88, %cst_29 {dimension_numbers = #tpu.dot_dimension_numbers<[1], [0], [0], [1], [0, 0, 1, 1], [], []>} : vector<16x32xf32>, vector<32x64xf32>, vector<16x64xf32> -> vector<16x64xf32>
    %c0_30 = arith.constant 0 : index
    %c0_31 = arith.constant 0 : index
    %90 = vector.load %arg8[%c0_30, %c0_31] : memref<1x64xf32, #tpu.memory_space<vmem>>, vector<1x64xf32>
    %91 = vector.broadcast %90 : vector<1x64xf32> to vector<16x64xf32>
    %92 = arith.addf %89, %91 : vector<16x64xf32>
    %cst_32 = arith.constant 0.000000e+00 : f32
    %93 = vector.broadcast %cst_32 : f32 to vector<16x64xf32>
    %94 = arith.maximumf %92, %93 : vector<16x64xf32>
    %c0_33 = arith.constant 0 : index
    %c0_34 = arith.constant 0 : index
    %95 = vector.load %arg9[%c0_33, %c0_34] : memref<64x32xf32, #tpu.memory_space<vmem>>, vector<64x32xf32>
    %cst_35 = arith.constant dense<0.000000e+00> : vector<16x32xf32>
    %96 = tpu.matmul %94, %95, %cst_35 {dimension_numbers = #tpu.dot_dimension_numbers<[1], [0], [0], [1], [0, 0, 1, 1], [], []>} : vector<16x64xf32>, vector<64x32xf32>, vector<16x32xf32> -> vector<16x32xf32>
    %c0_36 = arith.constant 0 : index
    %c0_37 = arith.constant 0 : index
    %97 = vector.load %arg10[%c0_36, %c0_37] : memref<1x32xf32, #tpu.memory_space<vmem>>, vector<1x32xf32>
    %98 = vector.broadcast %97 : vector<1x32xf32> to vector<16x32xf32>
    %99 = arith.addf %96, %98 : vector<16x32xf32>
    %100 = arith.addf %87, %99 : vector<16x32xf32>
    %cst_38 = arith.constant dense<0.000000e+00> : vector<16xf32>
    %101 = vector.multi_reduction <add>, %100, %cst_38 [1] : vector<16x32xf32> to vector<16xf32>
    %102 = vector.shape_cast %101 : vector<16xf32> to vector<16x1xf32>
    %cst_39 = arith.constant 3.200000e+01 : f32
    %103 = vector.broadcast %cst_39 : f32 to vector<16x1xf32>
    %104 = arith.divf %102, %103 : vector<16x1xf32>
    %105 = vector.broadcast %104 : vector<16x1xf32> to vector<16x32xf32>
    %106 = arith.subf %100, %105 : vector<16x32xf32>
    %107 = arith.mulf %106, %106 : vector<16x32xf32>
    %cst_40 = arith.constant dense<0.000000e+00> : vector<16xf32>
    %108 = vector.multi_reduction <add>, %107, %cst_40 [1] : vector<16x32xf32> to vector<16xf32>
    %109 = vector.shape_cast %108 : vector<16xf32> to vector<16x1xf32>
    %cst_41 = arith.constant 3.200000e+01 : f32
    %110 = vector.broadcast %cst_41 : f32 to vector<16x1xf32>
    %111 = arith.divf %109, %110 : vector<16x1xf32>
    %112 = vector.broadcast %104 : vector<16x1xf32> to vector<16x32xf32>
    %113 = arith.subf %100, %112 : vector<16x32xf32>
    %cst_42 = arith.constant 9.99999974E-6 : f32
    %114 = vector.broadcast %cst_42 : f32 to vector<16x1xf32>
    %115 = arith.addf %111, %114 : vector<16x1xf32>
    %116 = math.rsqrt %115 : vector<16x1xf32>
    %117 = vector.broadcast %116 : vector<16x1xf32> to vector<16x32xf32>
    %118 = arith.mulf %113, %117 : vector<16x32xf32>
    %c0_43 = arith.constant 0 : index
    %c0_44 = arith.constant 0 : index
    %119 = vector.load %arg11[%c0_43, %c0_44] : memref<1x32xf32, #tpu.memory_space<vmem>>, vector<1x32xf32>
    %120 = vector.broadcast %119 : vector<1x32xf32> to vector<16x32xf32>
    %121 = arith.mulf %118, %120 : vector<16x32xf32>
    %c0_45 = arith.constant 0 : index
    %c0_46 = arith.constant 0 : index
    %122 = vector.load %arg12[%c0_45, %c0_46] : memref<1x32xf32, #tpu.memory_space<vmem>>, vector<1x32xf32>
    %123 = vector.broadcast %122 : vector<1x32xf32> to vector<16x32xf32>
    %124 = arith.addf %121, %123 : vector<16x32xf32>
    %125 = vector.shape_cast %124 : vector<16x32xf32> to vector<2x8x32xf32>
    %c0_47 = arith.constant 0 : index
    %c0_48 = arith.constant 0 : index
    %c0_49 = arith.constant 0 : index
    %126 = vector.load %arg13[%c0_47, %c0_48, %c0_49] : memref<2x8x32xf32, #tpu.memory_space<vmem>>, vector<2x8x32xf32>
    tpu.vector_store %arg13[%c0_47, %c0_48, %c0_49], %125 {strides = array<i32>} : memref<2x8x32xf32, #tpu.memory_space<vmem>>, vector<2x8x32xf32>,
    return
  }
}

</mosaic_0001>

<llo_original>
// kernel: tpu_custom_call.1
$region0: #{tpu_custom_call.1}
  #allocation0 [shape = 'u32[]', space=smem, size = 0x4, offset = 0x4, fixed_abs, tag = 'smem constant byte address 0x4 - core index']
  #allocation1 [shape = 'u32[144,128]{1,0:T(1,128)}', space=vmem, size = 0x12000, scoped, tag = 'internal scratch']
  %s0 = inlined_call_operand.hbm [shape: f32[2,8,32], index: 0, kind: input, shape index: {}]
  %s1 = inlined_call_operand.vmem [shape: f32[32,96], index: 1, kind: input, shape index: {}]
  %s2 = inlined_call_operand.vmem [shape: f32[1,96], index: 2, kind: input, shape index: {}]
  %s3 = inlined_call_operand.vmem [shape: f32[32,32], index: 3, kind: input, shape index: {}]
  %s4 = inlined_call_operand.vmem [shape: f32[1,32], index: 4, kind: input, shape index: {}]
  %s5 = inlined_call_operand.vmem [shape: f32[1,32], index: 5, kind: input, shape index: {}]
  %s6 = inlined_call_operand.vmem [shape: f32[1,32], index: 6, kind: input, shape index: {}]
  %s7 = inlined_call_operand.vmem [shape: f32[32,64], index: 7, kind: input, shape index: {}]
  %s8 = inlined_call_operand.vmem [shape: f32[1,64], index: 8, kind: input, shape index: {}]
  %s9 = inlined_call_operand.vmem [shape: f32[64,32], index: 9, kind: input, shape index: {}]
  %s10 = inlined_call_operand.vmem [shape: f32[1,32], index: 10, kind: input, shape index: {}]
  %s11 = inlined_call_operand.vmem [shape: f32[1,32], index: 11, kind: input, shape index: {}]
  %s12 = inlined_call_operand.vmem [shape: f32[1,32], index: 12, kind: input, shape index: {}]
  %s13 = inlined_call_operand.hbm [shape: f32[2,8,32], index: 13, kind: output, shape index: {}]
  %s14 = sld [smem:[#allocation0]]
  $region66: #{tpu_custom_call.1} parent=0
    _
  %s16 = ssub.s32 1, %s14
  %s17 = scalar_select 0, %s16, %s14
  $region1: #{tpu_custom_call.1} parent=0
    #allocation2 [shape = 'u8[8192]{0}', space=vmem, size = 0x2000, scoped, tag = 'input window, operand 0, single buffered']
    #allocation3 [shape = 's32[1]{0}', space=sflag, size = 0x4, scoped, tag = 'scoped memory for tpu_custom_call.1']
    #allocation4 [shape = 's32[1]{0}', space=sflag, size = 0x4, scoped, tag = 'scoped memory for tpu_custom_call.1']
    #allocation5 [shape = 'u8[8192]{0}', space=vmem, size = 0x2000, scoped, tag = 'output window, operand 0, single buffered']
    %18 = vsyncpa [#allocation3], 0
    %19 = vsyncpa [#allocation4], 0
    // Predicated region
    $region2: #{tpu_custom_call.1} parent=1 // pred_check
      _
    $region3: #{tpu_custom_call.1} parent=1 // pred_check_branch
      %21 = sbr.rel (0) target = $region5
    $region4: #{tpu_custom_call.1} parent=1 // pred_region
      %s23 = ssub.s32 256, 256
      %24 = vsyncadd [#allocation3], %s23
      %s25 = sshll.u32 [#allocation2], 4
      %s26 = int_to_ptr.vmem [resolvable:$true] %s25
      %31 = dma.hbm_to_vmem [thread:$0]  %s0, 256, %s26, [#allocation3], 128, 128, 8
    $region5: #{tpu_custom_call.1} parent=1 // pred_fallthru
      _
    // Predicated region
    $region6: #{tpu_custom_call.1} parent=1 // pred_check
      _
    $region7: #{tpu_custom_call.1} parent=1 // pred_check_branch
      %33 = sbr.rel (0) target = $region9
    $region8: #{tpu_custom_call.1} parent=1 // pred_region
      _
    $region9: #{tpu_custom_call.1} parent=1 // pred_fallthru
      _
    // Predicated region
    $region10: #{tpu_custom_call.1} parent=1 // pred_check
      _
    $region11: #{tpu_custom_call.1} parent=1 // pred_check_branch
      %35 = sbr.rel (0) target = $region13
    $region12: #{tpu_custom_call.1} parent=1 // pred_region
      _
    $region13: #{tpu_custom_call.1} parent=1 // pred_fallthru
      _
    // Predicated region
    $region14: #{tpu_custom_call.1} parent=1 // pred_check
      _
    $region15: #{tpu_custom_call.1} parent=1 // pred_check_branch
      %37 = sbr.rel (0) target = $region17
    $region16: #{tpu_custom_call.1} parent=1 // pred_region
      _
    $region17: #{tpu_custom_call.1} parent=1 // pred_fallthru
      _
    // Predicated region
    $region18: #{tpu_custom_call.1} parent=1 // pred_check
      _
    $region19: #{tpu_custom_call.1} parent=1 // pred_check_branch
      %39 = sbr.rel (0) target = $region21
    $region20: #{tpu_custom_call.1} parent=1 // pred_region
      _
    $region21: #{tpu_custom_call.1} parent=1 // pred_fallthru
      _
    // Predicated region
    $region22: #{tpu_custom_call.1} parent=1 // pred_check
      _
    $region23: #{tpu_custom_call.1} parent=1 // pred_check_branch
      %41 = sbr.rel (0) target = $region25
    $region24: #{tpu_custom_call.1} parent=1 // pred_region
      _
    $region25: #{tpu_custom_call.1} parent=1 // pred_fallthru
      _
    // Predicated region
    $region26: #{tpu_custom_call.1} parent=1 // pred_check
      _
    $region27: #{tpu_custom_call.1} parent=1 // pred_check_branch
      %43 = sbr.rel (0) target = $region29
    $region28: #{tpu_custom_call.1} parent=1 // pred_region
      _
    $region29: #{tpu_custom_call.1} parent=1 // pred_fallthru
      _
    // Predicated region
    $region30: #{tpu_custom_call.1} parent=1 // pred_check
      _
    $region31: #{tpu_custom_call.1} parent=1 // pred_check_branch
      %45 = sbr.rel (0) target = $region33
    $region32: #{tpu_custom_call.1} parent=1 // pred_region
      _
    $region33: #{tpu_custom_call.1} parent=1 // pred_fallthru
      _
    // Predicated region
    $region34: #{tpu_custom_call.1} parent=1 // pred_check
      _
    $region35: #{tpu_custom_call.1} parent=1 // pred_check_branch
      %47 = sbr.rel (0) target = $region37
    $region36: #{tpu_custom_call.1} parent=1 // pred_region
      _
    $region37: #{tpu_custom_call.1} parent=1 // pred_fallthru
      _
    // Predicated region
    $region38: #{tpu_custom_call.1} parent=1 // pred_check
      _
    $region39: #{tpu_custom_call.1} parent=1 // pred_check_branch
      %49 = sbr.rel (0) target = $region41
    $region40: #{tpu_custom_call.1} parent=1 // pred_region
      _
    $region41: #{tpu_custom_call.1} parent=1 // pred_fallthru
      _
    // Predicated region
    $region42: #{tpu_custom_call.1} parent=1 // pred_check
      _
    $region43: #{tpu_custom_call.1} parent=1 // pred_check_branch
      %51 = sbr.rel (0) target = $region45
    $region44: #{tpu_custom_call.1} parent=1 // pred_region
      _
    $region45: #{tpu_custom_call.1} parent=1 // pred_fallthru
      _
    // Predicated region
    $region46: #{tpu_custom_call.1} parent=1 // pred_check
      _
    $region47: #{tpu_custom_call.1} parent=1 // pred_check_branch
      %53 = sbr.rel (0) target = $region49
    $region48: #{tpu_custom_call.1} parent=1 // pred_region
      _
    $region49: #{tpu_custom_call.1} parent=1 // pred_fallthru
      _
    // Predicated region
    $region50: #{tpu_custom_call.1} parent=1 // pred_check
      _
    $region51: #{tpu_custom_call.1} parent=1 // pred_check_branch
      %55 = sbr.rel (0) target = $region53
    $region52: #{tpu_custom_call.1} parent=1 // pred_region
      _
    $region53: #{tpu_custom_call.1} parent=1 // pred_fallthru
      _
    // Predicated region
    $region54: #{tpu_custom_call.1} parent=1 // pred_check
      _
    $region55: #{tpu_custom_call.1} parent=1 // pred_check_branch
      %57 = sbr.rel (0) target = $region57
    $region56: #{tpu_custom_call.1} parent=1 // pred_region
      %58 = dma.done [#allocation3], 256
    $region57: #{tpu_custom_call.1} parent=1 // pred_fallthru
      _
    %v59 = vld [vmem:[#allocation2] sm:$0xff]
    %v60 = vld [vmem:[#allocation2 + $0x8] sm:$0xff]
    %v61 = vld [vmem:[%s1] sm:$0xff]
    %v62 = vld [vmem:[%s1 + $0x8] sm:$0xff]
    %v63 = vld [vmem:[%s1 + $0x10] sm:$0xff]
    %v64 = vld [vmem:[%s1 + $0x18] sm:$0xff]
    %v65 = vld [vmem:[%s2] sm:$0x1]
    %v67 = vlaneseq
    %v68 = vshrl.u32 %v67, 7
    %v69 = vsub.s32 0, %v68
    %v70 = vrot.slane %v65, %v69
    %vm72 = vcmask 261120
    %v74 = vsel %vm72, %v59, 0
    %v77 = vsel %vm72, %v60, 0
    %79 = vmatprep.subr.mxu0 0.0
    %80 = vmatpush1.msra.mxu0 0.0
    %81 = vmatprep.subr.mxu0 0.0
    %82 = vmatpush1.msra.mxu0 0.0
    %83 = vmatprep.subr.mxu0 0.0
    %84 = vmatpush1.msra.mxu0 0.0
    %85 = vmatprep.subr.mxu0 0.0
    %86 = vmatpush1.msra.mxu0 0.0
    %87 = vmatprep.subr.mxu0 0.0
    %88 = vmatpush1.msra.mxu0 0.0
    %89 = vmatprep.subr.mxu0 0.0
    %90 = vmatpush1.msra.mxu0 0.0
    %91 = vmatprep.subr.mxu0 0.0
    %92 = vmatpush1.msra.mxu0 0.0
    %93 = vmatprep.subr.mxu0 0.0
    %94 = vmatpush1.msra.mxu0 0.0
    %95 = vmatprep.subr.mxu0 0.0
    %96 = vmatpush1.msra.mxu0 0.0
    %97 = vmatprep.subr.mxu0 0.0
    %98 = vmatpush1.msra.mxu0 0.0
    %99 = vmatprep.subr.mxu0 0.0
    %100 = vmatpush1.msra.mxu0 0.0
    %101 = vmatprep.subr.mxu0 0.0
    %102 = vmatpush1.msra.mxu0 0.0
    %103 = vmatprep.subr.mxu0 0.0
    %104 = vmatpush1.msra.mxu0 %v64
    %105 = vmatprep.subr.mxu0 0.0
    %106 = vmatpush1.msra.mxu0 %v63
    %107 = vmatprep.subr.mxu0 0.0
    %108 = vmatpush1.msra.mxu0 %v62
    %109 = vmatprep.subr.mxu0 0.0
    %110 = vmatpush1.msra.mxu0 %v61
    %111 = vmatprep.subr.mxu0 0.0
    %112 = vmatpush2.msra.mxu0 0.0
    %113 = vmatprep.subr.mxu0 0.0
    %114 = vmatpush2.msra.mxu0 0.0
    %115 = vmatprep.subr.mxu0 0.0
    %116 = vmatpush2.msra.mxu0 0.0
    %117 = vmatprep.subr.mxu0 0.0
    %118 = vmatpush2.msra.mxu0 0.0
    %119 = vmatprep.subr.mxu0 0.0
    %120 = vmatpush2.msra.mxu0 0.0
    %121 = vmatprep.subr.mxu0 0.0
    %122 = vmatpush2.msra.mxu0 0.0
    %123 = vmatprep.subr.mxu0 0.0
    %124 = vmatpush2.msra.mxu0 0.0
    %125 = vmatprep.subr.mxu0 0.0
    %126 = vmatpush2.msra.mxu0 0.0
    %127 = vmatprep.subr.mxu0 0.0
    %128 = vmatpush2.msra.mxu0 0.0
    %129 = vmatprep.subr.mxu0 0.0
    %130 = vmatpush2.msra.mxu0 0.0
    %131 = vmatprep.subr.mxu0 0.0
    %132 = vmatpush2.msra.mxu0 0.0
    %133 = vmatprep.subr.mxu0 0.0
    %134 = vmatpush2.msra.mxu0 0.0
    %135 = vmatprep.subr.mxu0 0.0
    %136 = vmatpush2.msra.mxu0 0.0
    %137 = vmatprep.subr.mxu0 0.0
    %138 = vmatpush2.msra.mxu0 0.0
    %139 = vmatprep.subr.mxu0 0.0
    %140 = vmatpush2.msra.mxu0 0.0
    %141 = vmatprep.subr.mxu0 0.0
    %142 = vmatpush2.msra.mxu0 0.0
    %143 = vmatprep.mubr.f32.mxu0 0.0
    %144 = vmatmul.mubr.f32.gmra.mxu0 %v74
    %v145 = vpop.f32.mrf.mxu0
    %v146 = vadd.f32 %v70, %v145
    %v147 = vpop.f32.mrf.mxu0
    %148 = vmatprep.mubr.f32.mxu0 0.0
    %149 = vmatmul.mubr.f32.gmra.mxu0 %v77
    %v150 = vpop.f32.mrf.mxu0
    %v151 = vadd.f32 %v70, %v150
    %v152 = vpop.f32.mrf.mxu0
    %153 = vdwg.mxu0
    %v154 = vlaneseq
    %v155 = vand.u32 %v154, 127
    %v156 = vlaneseq
    %v157 = vshrl.u32 %v156, 7
    %v158 = vmul.u32 %v157, 8
    %vm159 = vcmp.ge.s32.totalorder %v155, %v158
    %v160 = vadd.s32 %v157, 1
    %v161 = vmul.u32 %v160, 8
    %vm162 = vcmp.lt.s32.totalorder %v155, %v161
    %vm163 = vmand %vm159, %vm162
    %v164 = vsel %vm163, 1, 0
    %v165 = vcvt.s32.f32 %v164
    %v168 = vunpack.c.l.s4 1966171168
    %v169 = vunpack.c.0.s8 %v168
    %v170 = vlaneseq
    %v171 = vshrl.u32 %v170, 7
    %v172 = vsub.s32 %v169, %v171
    %v173 = vrot.slane %v165, %v172
    %v174 = vcombine.high %v173, %v173
    %v176 = vunpack.c.l.s4 1966171168
    %v177 = vunpack.c.0.s8 %v176
    %v178 = vlaneseq
    %v179 = vshrl.u32 %v178, 7
    %v180 = vsub.s32 %v177, %v179
    %v181 = vrot.slane %v173, %v180
    %v183 = vunpack.c.l.s4 1966171168
    %v184 = vunpack.c.0.s8 %v183
    %v185 = vlaneseq
    %v186 = vshrl.u32 %v185, 7
    %v187 = vsub.s32 %v184, %v186
    %v188 = vrot.slane %v174, %v187
    %v189 = vcombine.high %v181, %v181
    %v190 = vcombine.high %v188, %v188
    %v191 = vlaneseq
    %v192 = vshrl.u32 %v191, 7
    %v193 = vsub.s32 0, %v192
    %v194 = vrot.slane %v181, %v193
    %v195 = vlaneseq
    %v196 = vshrl.u32 %v195, 7
    %v197 = vsub.s32 0, %v196
    %v198 = vrot.slane %v188, %v197
    %v199 = vlaneseq
    %v200 = vshrl.u32 %v199, 7
    %v201 = vsub.s32 0, %v200
    %v202 = vrot.slane %v189, %v201
    %v203 = vlaneseq
    %v204 = vshrl.u32 %v203, 7
    %v205 = vsub.s32 0, %v204
    %v206 = vrot.slane %v190, %v205
    %v211 = vmul.f32 %v146, %v194
    %v212 = vmul.f32 %v146, %v198
    %v213 = vmul.f32 %v146, %v202
    %v214 = vmul.f32 %v146, %v206
    %v215 = vmul.f32 %v151, %v194
    %v216 = vmul.f32 %v151, %v198
    %v217 = vmul.f32 %v151, %v202
    %v218 = vmul.f32 %v151, %v206
    %219 = vrot.lane.b32.xlu0 %v194, 64
    %v220 = vpop.permute.xlu0 %219
    %221 = vrot.lane.b32.xlu0 %v198, 64
    %v222 = vpop.permute.xlu0 %221
    %223 = vrot.lane.b32.xlu0 %v202, 64
    %v224 = vpop.permute.xlu0 %223
    %225 = vrot.lane.b32.xlu0 %v206, 64
    %v226 = vpop.permute.xlu0 %225
    %v231 = vmul.f32 %v146, %v220
    %v232 = vmul.f32 %v146, %v222
    %v233 = vmul.f32 %v146, %v224
    %v234 = vmul.f32 %v146, %v226
    %v235 = vmul.f32 %v151, %v220
    %v236 = vmul.f32 %v151, %v222
    %v237 = vmul.f32 %v151, %v224
    %v238 = vmul.f32 %v151, %v226
    %240 = vrot.lane.b32.xlu0 %v146, 96
    %v241 = vpop.permute.xlu0 %240
    %v243 = vsel %vm72, %v211, 0
    %v245 = vsel %vm72, %v241, 0
    %247 = vmatprep.subr.mxu0 0.0
    %248 = vmatpush1.xpose.msra.mxu0 0.0
    %249 = vmatprep.subr.mxu0 0.0
    %250 = vmatpush1.xpose.msra.mxu0 0.0
    %251 = vmatprep.subr.mxu0 0.0
    %252 = vmatpush1.xpose.msra.mxu0 0.0
    %253 = vmatprep.subr.mxu0 0.0
    %254 = vmatpush1.xpose.msra.mxu0 0.0
    %255 = vmatprep.subr.mxu0 0.0
    %256 = vmatpush1.xpose.msra.mxu0 0.0
    %257 = vmatprep.subr.mxu0 0.0
    %258 = vmatpush1.xpose.msra.mxu0 0.0
    %259 = vmatprep.subr.mxu0 0.0
    %260 = vmatpush1.xpose.msra.mxu0 0.0
    %261 = vmatprep.subr.mxu0 0.0
    %262 = vmatpush1.xpose.msra.mxu0 0.0
    %263 = vmatprep.subr.mxu0 0.0
    %264 = vmatpush1.xpose.msra.mxu0 0.0
    %265 = vmatprep.subr.mxu0 0.0
    %266 = vmatpush1.xpose.msra.mxu0 0.0
    %267 = vmatprep.subr.mxu0 0.0
    %268 = vmatpush1.xpose.msra.mxu0 0.0
    %269 = vmatprep.subr.mxu0 0.0
    %270 = vmatpush1.xpose.msra.mxu0 0.0
    %271 = vmatprep.subr.mxu0 0.0
    %272 = vmatpush1.xpose.msra.mxu0 0.0
    %273 = vmatprep.subr.mxu0 0.0
    %274 = vmatpush1.xpose.msra.mxu0 0.0
    %275 = vmatprep.subr.mxu0 0.0
    %276 = vmatpush1.xpose.msra.mxu0 0.0
    %277 = vmatprep.subr.mxu0 0.0
    %278 = vmatpush1.xpose.msra.mxu0 %v245
    %279 = vmatprep.subr.mxu0 0.0
    %280 = vmatpush2.xpose.msra.mxu0 0.0
    %281 = vmatprep.subr.mxu0 0.0
    %282 = vmatpush2.xpose.msra.mxu0 0.0
    %283 = vmatprep.subr.mxu0 0.0
    %284 = vmatpush2.xpose.msra.mxu0 0.0
    %285 = vmatprep.subr.mxu0 0.0
    %286 = vmatpush2.xpose.msra.mxu0 0.0
    %287 = vmatprep.subr.mxu0 0.0
    %288 = vmatpush2.xpose.msra.mxu0 0.0
    %289 = vmatprep.subr.mxu0 0.0
    %290 = vmatpush2.xpose.msra.mxu0 0.0
    %291 = vmatprep.subr.mxu0 0.0
    %292 = vmatpush2.xpose.msra.mxu0 0.0
    %293 = vmatprep.subr.mxu0 0.0
    %294 = vmatpush2.xpose.msra.mxu0 0.0
    %295 = vmatprep.subr.mxu0 0.0
    %296 = vmatpush2.xpose.msra.mxu0 0.0
    %297 = vmatprep.subr.mxu0 0.0
    %298 = vmatpush2.xpose.msra.mxu0 0.0
    %299 = vmatprep.subr.mxu0 0.0
    %300 = vmatpush2.xpose.msra.mxu0 0.0
    %301 = vmatprep.subr.mxu0 0.0
    %302 = vmatpush2.xpose.msra.mxu0 0.0
    %303 = vmatprep.subr.mxu0 0.0
    %304 = vmatpush2.xpose.msra.mxu0 0.0
    %305 = vmatprep.subr.mxu0 0.0
    %306 = vmatpush2.xpose.msra.mxu0 0.0
    %307 = vmatprep.subr.mxu0 0.0
    %308 = vmatpush2.xpose.msra.mxu0 0.0
    %309 = vmatprep.subr.mxu0 0.0
    %310 = vmatpush2.xpose.msra.mxu0 0.0
    %311 = vmatprep.mubr.f32.mxu0 0.0
    %312 = vmatmul.mubr.f32.gmra.mxu0 %v243
    %v313 = vpop.f32.mrf.mxu0
    %v314 = vadd.f32 0.0, %v313
    %v315 = vpop.f32.mrf.mxu0
    %316 = vdwg.mxu0
    %v318 = vsel %vm72, %v212, 0
    %320 = vmatprep.subr.mxu0 0.0
    %321 = vmatpush1.xpose.msra.mxu0 0.0
    %322 = vmatprep.subr.mxu0 0.0
    %323 = vmatpush1.xpose.msra.mxu0 0.0
    %324 = vmatprep.subr.mxu0 0.0
    %325 = vmatpush1.xpose.msra.mxu0 0.0
    %326 = vmatprep.subr.mxu0 0.0
    %327 = vmatpush1.xpose.msra.mxu0 0.0
    %328 = vmatprep.subr.mxu0 0.0
    %329 = vmatpush1.xpose.msra.mxu0 0.0
    %330 = vmatprep.subr.mxu0 0.0
    %331 = vmatpush1.xpose.msra.mxu0 0.0
    %332 = vmatprep.subr.mxu0 0.0
    %333 = vmatpush1.xpose.msra.mxu0 0.0
    %334 = vmatprep.subr.mxu0 0.0
    %335 = vmatpush1.xpose.msra.mxu0 0.0
    %336 = vmatprep.subr.mxu0 0.0
    %337 = vmatpush1.xpose.msra.mxu0 0.0
    %338 = vmatprep.subr.mxu0 0.0
    %339 = vmatpush1.xpose.msra.mxu0 0.0
    %340 = vmatprep.subr.mxu0 0.0
    %341 = vmatpush1.xpose.msra.mxu0 0.0
    %342 = vmatprep.subr.mxu0 0.0
    %343 = vmatpush1.xpose.msra.mxu0 0.0
    %344 = vmatprep.subr.mxu0 0.0
    %345 = vmatpush1.xpose.msra.mxu0 0.0
    %346 = vmatprep.subr.mxu0 0.0
    %347 = vmatpush1.xpose.msra.mxu0 0.0
    %348 = vmatprep.subr.mxu0 0.0
    %349 = vmatpush1.xpose.msra.mxu0 0.0
    %350 = vmatprep.subr.mxu0 0.0
    %351 = vmatpush1.xpose.msra.mxu0 %v245
    %352 = vmatprep.subr.mxu0 0.0
    %353 = vmatpush2.xpose.msra.mxu0 0.0
    %354 = vmatprep.subr.mxu0 0.0
    %355 = vmatpush2.xpose.msra.mxu0 0.0
    %356 = vmatprep.subr.mxu0 0.0
    %357 = vmatpush2.xpose.msra.mxu0 0.0
    %358 = vmatprep.subr.mxu0 0.0
    %359 = vmatpush2.xpose.msra.mxu0 0.0
    %360 = vmatprep.subr.mxu0 0.0
    %361 = vmatpush2.xpose.msra.mxu0 0.0
    %362 = vmatprep.subr.mxu0 0.0
    %363 = vmatpush2.xpose.msra.mxu0 0.0
    %364 = vmatprep.subr.mxu0 0.0
    %365 = vmatpush2.xpose.msra.mxu0 0.0
    %366 = vmatprep.subr.mxu0 0.0
    %367 = vmatpush2.xpose.msra.mxu0 0.0
    %368 = vmatprep.subr.mxu0 0.0
    %369 = vmatpush2.xpose.msra.mxu0 0.0
    %370 = vmatprep.subr.mxu0 0.0
    %371 = vmatpush2.xpose.msra.mxu0 0.0
    %372 = vmatprep.subr.mxu0 0.0
    %373 = vmatpush2.xpose.msra.mxu0 0.0
    %374 = vmatprep.subr.mxu0 0.0
    %375 = vmatpush2.xpose.msra.mxu0 0.0
    %376 = vmatprep.subr.mxu0 0.0
    %377 = vmatpush2.xpose.msra.mxu0 0.0
    %378 = vmatprep.subr.mxu0 0.0
    %379 = vmatpush2.xpose.msra.mxu0 0.0
    %380 = vmatprep.subr.mxu0 0.0
    %381 = vmatpush2.xpose.msra.mxu0 0.0
    %382 = vmatprep.subr.mxu0 0.0
    %383 = vmatpush2.xpose.msra.mxu0 0.0
    %384 = vmatprep.mubr.f32.mxu0 0.0
    %385 = vmatmul.mubr.f32.gmra.mxu0 %v318
    %v386 = vpop.f32.mrf.mxu0
    %v387 = vadd.f32 0.0, %v386
    %v388 = vpop.f32.mrf.mxu0
    %389 = vdwg.mxu0
    %v391 = vsel %vm72, %v213, 0
    %393 = vmatprep.subr.mxu0 0.0
    %394 = vmatpush1.xpose.msra.mxu0 0.0
    %395 = vmatprep.subr.mxu0 0.0
    %396 = vmatpush1.xpose.msra.mxu0 0.0
    %397 = vmatprep.subr.mxu0 0.0
    %398 = vmatpush1.xpose.msra.mxu0 0.0
    %399 = vmatprep.subr.mxu0 0.0
    %400 = vmatpush1.xpose.msra.mxu0 0.0
    %401 = vmatprep.subr.mxu0 0.0
    %402 = vmatpush1.xpose.msra.mxu0 0.0
    %403 = vmatprep.subr.mxu0 0.0
    %404 = vmatpush1.xpose.msra.mxu0 0.0
    %405 = vmatprep.subr.mxu0 0.0
    %406 = vmatpush1.xpose.msra.mxu0 0.0
    %407 = vmatprep.subr.mxu0 0.0
    %408 = vmatpush1.xpose.msra.mxu0 0.0
    %409 = vmatprep.subr.mxu0 0.0
    %410 = vmatpush1.xpose.msra.mxu0 0.0
    %411 = vmatprep.subr.mxu0 0.0
    %412 = vmatpush1.xpose.msra.mxu0 0.0
    %413 = vmatprep.subr.mxu0 0.0
    %414 = vmatpush1.xpose.msra.mxu0 0.0
    %415 = vmatprep.subr.mxu0 0.0
    %416 = vmatpush1.xpose.msra.mxu0 0.0
    %417 = vmatprep.subr.mxu0 0.0
    %418 = vmatpush1.xpose.msra.mxu0 0.0
    %419 = vmatprep.subr.mxu0 0.0
    %420 = vmatpush1.xpose.msra.mxu0 0.0
    %421 = vmatprep.subr.mxu0 0.0
    %422 = vmatpush1.xpose.msra.mxu0 0.0
    %423 = vmatprep.subr.mxu0 0.0
    %424 = vmatpush1.xpose.msra.mxu0 %v245
    %425 = vmatprep.subr.mxu0 0.0
    %426 = vmatpush2.xpose.msra.mxu0 0.0
    %427 = vmatprep.subr.mxu0 0.0
    %428 = vmatpush2.xpose.msra.mxu0 0.0
    %429 = vmatprep.subr.mxu0 0.0
    %430 = vmatpush2.xpose.msra.mxu0 0.0
    %431 = vmatprep.subr.mxu0 0.0
    %432 = vmatpush2.xpose.msra.mxu0 0.0
    %433 = vmatprep.subr.mxu0 0.0
    %434 = vmatpush2.xpose.msra.mxu0 0.0
    %435 = vmatprep.subr.mxu0 0.0
    %436 = vmatpush2.xpose.msra.mxu0 0.0
    %437 = vmatprep.subr.mxu0 0.0
    %438 = vmatpush2.xpose.msra.mxu0 0.0
    %439 = vmatprep.subr.mxu0 0.0
    %440 = vmatpush2.xpose.msra.mxu0 0.0
    %441 = vmatprep.subr.mxu0 0.0
    %442 = vmatpush2.xpose.msra.mxu0 0.0
    %443 = vmatprep.subr.mxu0 0.0
    %444 = vmatpush2.xpose.msra.mxu0 0.0
    %445 = vmatprep.subr.mxu0 0.0
    %446 = vmatpush2.xpose.msra.mxu0 0.0
    %447 = vmatprep.subr.mxu0 0.0
    %448 = vmatpush2.xpose.msra.mxu0 0.0
    %449 = vmatprep.subr.mxu0 0.0
    %450 = vmatpush2.xpose.msra.mxu0 0.0
    %451 = vmatprep.subr.mxu0 0.0
    %452 = vmatpush2.xpose.msra.mxu0 0.0
    %453 = vmatprep.subr.mxu0 0.0
    %454 = vmatpush2.xpose.msra.mxu0 0.0
    %455 = vmatprep.subr.mxu0 0.0
    %456 = vmatpush2.xpose.msra.mxu0 0.0
    %457 = vmatprep.mubr.f32.mxu0 0.0
    %458 = vmatmul.mubr.f32.gmra.mxu0 %v391
    %v459 = vpop.f32.mrf.mxu0
    %v460 = vadd.f32 0.0, %v459
    %v461 = vpop.f32.mrf.mxu0
    %462 = vdwg.mxu0
    %v464 = vsel %vm72, %v214, 0
    %466 = vmatprep.subr.mxu0 0.0
    %467 = vmatpush1.xpose.msra.mxu0 0.0
    %468 = vmatprep.subr.mxu0 0.0
    %469 = vmatpush1.xpose.msra.mxu0 0.0
    %470 = vmatprep.subr.mxu0 0.0
    %471 = vmatpush1.xpose.msra.mxu0 0.0
    %472 = vmatprep.subr.mxu0 0.0
    %473 = vmatpush1.xpose.msra.mxu0 0.0
    %474 = vmatprep.subr.mxu0 0.0
    %475 = vmatpush1.xpose.msra.mxu0 0.0
    %476 = vmatprep.subr.mxu0 0.0
    %477 = vmatpush1.xpose.msra.mxu0 0.0
    %478 = vmatprep.subr.mxu0 0.0
    %479 = vmatpush1.xpose.msra.mxu0 0.0
    %480 = vmatprep.subr.mxu0 0.0
    %481 = vmatpush1.xpose.msra.mxu0 0.0
    %482 = vmatprep.subr.mxu0 0.0
    %483 = vmatpush1.xpose.msra.mxu0 0.0
    %484 = vmatprep.subr.mxu0 0.0
    %485 = vmatpush1.xpose.msra.mxu0 0.0
    %486 = vmatprep.subr.mxu0 0.0
    %487 = vmatpush1.xpose.msra.mxu0 0.0
    %488 = vmatprep.subr.mxu0 0.0
    %489 = vmatpush1.xpose.msra.mxu0 0.0
    %490 = vmatprep.subr.mxu0 0.0
    %491 = vmatpush1.xpose.msra.mxu0 0.0
    %492 = vmatprep.subr.mxu0 0.0
    %493 = vmatpush1.xpose.msra.mxu0 0.0
    %494 = vmatprep.subr.mxu0 0.0
    %495 = vmatpush1.xpose.msra.mxu0 0.0
    %496 = vmatprep.subr.mxu0 0.0
    %497 = vmatpush1.xpose.msra.mxu0 %v245
    %498 = vmatprep.subr.mxu0 0.0
    %499 = vmatpush2.xpose.msra.mxu0 0.0
    %500 = vmatprep.subr.mxu0 0.0
    %501 = vmatpush2.xpose.msra.mxu0 0.0
    %502 = vmatprep.subr.mxu0 0.0
    %503 = vmatpush2.xpose.msra.mxu0 0.0
    %504 = vmatprep.subr.mxu0 0.0
    %505 = vmatpush2.xpose.msra.mxu0 0.0
    %506 = vmatprep.subr.mxu0 0.0
    %507 = vmatpush2.xpose.msra.mxu0 0.0
    %508 = vmatprep.subr.mxu0 0.0
    %509 = vmatpush2.xpose.msra.mxu0 0.0
    %510 = vmatprep.subr.mxu0 0.0
    %511 = vmatpush2.xpose.msra.mxu0 0.0
    %512 = vmatprep.subr.mxu0 0.0
    %513 = vmatpush2.xpose.msra.mxu0 0.0
    %514 = vmatprep.subr.mxu0 0.0
    %515 = vmatpush2.xpose.msra.mxu0 0.0
    %516 = vmatprep.subr.mxu0 0.0
    %517 = vmatpush2.xpose.msra.mxu0 0.0
    %518 = vmatprep.subr.mxu0 0.0
    %519 = vmatpush2.xpose.msra.mxu0 0.0
    %520 = vmatprep.subr.mxu0 0.0
    %521 = vmatpush2.xpose.msra.mxu0 0.0
    %522 = vmatprep.subr.mxu0 0.0
    %523 = vmatpush2.xpose.msra.mxu0 0.0
    %524 = vmatprep.subr.mxu0 0.0
    %525 = vmatpush2.xpose.msra.mxu0 0.0
    %526 = vmatprep.subr.mxu0 0.0
    %527 = vmatpush2.xpose.msra.mxu0 0.0
    %528 = vmatprep.subr.mxu0 0.0
    %529 = vmatpush2.xpose.msra.mxu0 0.0
    %530 = vmatprep.mubr.f32.mxu0 0.0
    %531 = vmatmul.mubr.f32.gmra.mxu0 %v464
    %v532 = vpop.f32.mrf.mxu0
    %v533 = vadd.f32 0.0, %v532
    %v534 = vpop.f32.mrf.mxu0
    %535 = vdwg.mxu0
    %537 = vrot.lane.b32.xlu0 %v151, 96
    %v538 = vpop.permute.xlu0 %537
    %v540 = vsel %vm72, %v215, 0
    %v542 = vsel %vm72, %v538, 0
    %544 = vmatprep.subr.mxu0 0.0
    %545 = vmatpush1.xpose.msra.mxu0 0.0
    %546 = vmatprep.subr.mxu0 0.0
    %547 = vmatpush1.xpose.msra.mxu0 0.0
    %548 = vmatprep.subr.mxu0 0.0
    %549 = vmatpush1.xpose.msra.mxu0 0.0
    %550 = vmatprep.subr.mxu0 0.0
    %551 = vmatpush1.xpose.msra.mxu0 0.0
    %552 = vmatprep.subr.mxu0 0.0
    %553 = vmatpush1.xpose.msra.mxu0 0.0
    %554 = vmatprep.subr.mxu0 0.0
    %555 = vmatpush1.xpose.msra.mxu0 0.0
    %556 = vmatprep.subr.mxu0 0.0
    %557 = vmatpush1.xpose.msra.mxu0 0.0
    %558 = vmatprep.subr.mxu0 0.0
    %559 = vmatpush1.xpose.msra.mxu0 0.0
    %560 = vmatprep.subr.mxu0 0.0
    %561 = vmatpush1.xpose.msra.mxu0 0.0
    %562 = vmatprep.subr.mxu0 0.0
    %563 = vmatpush1.xpose.msra.mxu0 0.0
    %564 = vmatprep.subr.mxu0 0.0
    %565 = vmatpush1.xpose.msra.mxu0 0.0
    %566 = vmatprep.subr.mxu0 0.0
    %567 = vmatpush1.xpose.msra.mxu0 0.0
    %568 = vmatprep.subr.mxu0 0.0
    %569 = vmatpush1.xpose.msra.mxu0 0.0
    %570 = vmatprep.subr.mxu0 0.0
    %571 = vmatpush1.xpose.msra.mxu0 0.0
    %572 = vmatprep.subr.mxu0 0.0
    %573 = vmatpush1.xpose.msra.mxu0 0.0
    %574 = vmatprep.subr.mxu0 0.0
    %575 = vmatpush1.xpose.msra.mxu0 %v542
    %576 = vmatprep.subr.mxu0 0.0
    %577 = vmatpush2.xpose.msra.mxu0 0.0
    %578 = vmatprep.subr.mxu0 0.0
    %579 = vmatpush2.xpose.msra.mxu0 0.0
    %580 = vmatprep.subr.mxu0 0.0
    %581 = vmatpush2.xpose.msra.mxu0 0.0
    %582 = vmatprep.subr.mxu0 0.0
    %583 = vmatpush2.xpose.msra.mxu0 0.0
    %584 = vmatprep.subr.mxu0 0.0
    %585 = vmatpush2.xpose.msra.mxu0 0.0
    %586 = vmatprep.subr.mxu0 0.0
    %587 = vmatpush2.xpose.msra.mxu0 0.0
    %588 = vmatprep.subr.mxu0 0.0
    %589 = vmatpush2.xpose.msra.mxu0 0.0
    %590 = vmatprep.subr.mxu0 0.0
    %591 = vmatpush2.xpose.msra.mxu0 0.0
    %592 = vmatprep.subr.mxu0 0.0
    %593 = vmatpush2.xpose.msra.mxu0 0.0
    %594 = vmatprep.subr.mxu0 0.0
    %595 = vmatpush2.xpose.msra.mxu0 0.0
    %596 = vmatprep.subr.mxu0 0.0
    %597 = vmatpush2.xpose.msra.mxu0 0.0
    %598 = vmatprep.subr.mxu0 0.0
    %599 = vmatpush2.xpose.msra.mxu0 0.0
    %600 = vmatprep.subr.mxu0 0.0
    %601 = vmatpush2.xpose.msra.mxu0 0.0
    %602 = vmatprep.subr.mxu0 0.0
    %603 = vmatpush2.xpose.msra.mxu0 0.0
    %604 = vmatprep.subr.mxu0 0.0
    %605 = vmatpush2.xpose.msra.mxu0 0.0
    %606 = vmatprep.subr.mxu0 0.0
    %607 = vmatpush2.xpose.msra.mxu0 0.0
    %608 = vmatprep.mubr.f32.mxu0 0.0
    %609 = vmatmul.mubr.f32.gmra.mxu0 %v540
    %v610 = vpop.f32.mrf.mxu0
    %v611 = vadd.f32 0.0, %v610
    %v612 = vpop.f32.mrf.mxu0
    %613 = vdwg.mxu0
    %v615 = vsel %vm72, %v216, 0
    %617 = vmatprep.subr.mxu0 0.0
    %618 = vmatpush1.xpose.msra.mxu0 0.0
    %619 = vmatprep.subr.mxu0 0.0
    %620 = vmatpush1.xpose.msra.mxu0 0.0
    %621 = vmatprep.subr.mxu0 0.0
    %622 = vmatpush1.xpose.msra.mxu0 0.0
    %623 = vmatprep.subr.mxu0 0.0
    %624 = vmatpush1.xpose.msra.mxu0 0.0
    %625 = vmatprep.subr.mxu0 0.0
    %626 = vmatpush1.xpose.msra.mxu0 0.0
    %627 = vmatprep.subr.mxu0 0.0
    %628 = vmatpush1.xpose.msra.mxu0 0.0
    %629 = vmatprep.subr.mxu0 0.0
    %630 = vmatpush1.xpose.msra.mxu0 0.0
    %631 = vmatprep.subr.mxu0 0.0
    %632 = vmatpush1.xpose.msra.mxu0 0.0
    %633 = vmatprep.subr.mxu0 0.0
    %634 = vmatpush1.xpose.msra.mxu0 0.0
    %635 = vmatprep.subr.mxu0 0.0
    %636 = vmatpush1.xpose.msra.mxu0 0.0
    %637 = vmatprep.subr.mxu0 0.0
    %638 = vmatpush1.xpose.msra.mxu0 0.0
    %639 = vmatprep.subr.mxu0 0.0
    %640 = vmatpush1.xpose.msra.mxu0 0.0
    %641 = vmatprep.subr.mxu0 0.0
    %642 = vmatpush1.xpose.msra.mxu0 0.0
    %643 = vmatprep.subr.mxu0 0.0
    %644 = vmatpush1.xpose.msra.mxu0 0.0
    %645 = vmatprep.subr.mxu0 0.0
    %646 = vmatpush1.xpose.msra.mxu0 0.0
    %647 = vmatprep.subr.mxu0 0.0
    %648 = vmatpush1.xpose.msra.mxu0 %v542
    %649 = vmatprep.subr.mxu0 0.0
    %650 = vmatpush2.xpose.msra.mxu0 0.0
    %651 = vmatprep.subr.mxu0 0.0
    %652 = vmatpush2.xpose.msra.mxu0 0.0
    %653 = vmatprep.subr.mxu0 0.0
    %654 = vmatpush2.xpose.msra.mxu0 0.0
    %655 = vmatprep.subr.mxu0 0.0
    %656 = vmatpush2.xpose.msra.mxu0 0.0
    %657 = vmatprep.subr.mxu0 0.0
    %658 = vmatpush2.xpose.msra.mxu0 0.0
    %659 = vmatprep.subr.mxu0 0.0
    %660 = vmatpush2.xpose.msra.mxu0 0.0
    %661 = vmatprep.subr.mxu0 0.0
    %662 = vmatpush2.xpose.msra.mxu0 0.0
    %663 = vmatprep.subr.mxu0 0.0
    %664 = vmatpush2.xpose.msra.mxu0 0.0
    %665 = vmatprep.subr.mxu0 0.0
    %666 = vmatpush2.xpose.msra.mxu0 0.0
    %667 = vmatprep.subr.mxu0 0.0
    %668 = vmatpush2.xpose.msra.mxu0 0.0
    %669 = vmatprep.subr.mxu0 0.0
    %670 = vmatpush2.xpose.msra.mxu0 0.0
    %671 = vmatprep.subr.mxu0 0.0
    %672 = vmatpush2.xpose.msra.mxu0 0.0
    %673 = vmatprep.subr.mxu0 0.0
    %674 = vmatpush2.xpose.msra.mxu0 0.0
    %675 = vmatprep.subr.mxu0 0.0
    %676 = vmatpush2.xpose.msra.mxu0 0.0
    %677 = vmatprep.subr.mxu0 0.0
    %678 = vmatpush2.xpose.msra.mxu0 0.0
    %679 = vmatprep.subr.mxu0 0.0
    %680 = vmatpush2.xpose.msra.mxu0 0.0
    %681 = vmatprep.mubr.f32.mxu0 0.0
    %682 = vmatmul.mubr.f32.gmra.mxu0 %v615
    %v683 = vpop.f32.mrf.mxu0
    %v684 = vadd.f32 0.0, %v683
    %v685 = vpop.f32.mrf.mxu0
    %686 = vdwg.mxu0
    %v688 = vsel %vm72, %v217, 0
    %690 = vmatprep.subr.mxu0 0.0
    %691 = vmatpush1.xpose.msra.mxu0 0.0
    %692 = vmatprep.subr.mxu0 0.0
    %693 = vmatpush1.xpose.msra.mxu0 0.0
    %694 = vmatprep.subr.mxu0 0.0
    %695 = vmatpush1.xpose.msra.mxu0 0.0
    %696 = vmatprep.subr.mxu0 0.0
    %697 = vmatpush1.xpose.msra.mxu0 0.0
    %698 = vmatprep.subr.mxu0 0.0
    %699 = vmatpush1.xpose.msra.mxu0 0.0
    %700 = vmatprep.subr.mxu0 0.0
    %701 = vmatpush1.xpose.msra.mxu0 0.0
    %702 = vmatprep.subr.mxu0 0.0
    %703 = vmatpush1.xpose.msra.mxu0 0.0
    %704 = vmatprep.subr.mxu0 0.0
    %705 = vmatpush1.xpose.msra.mxu0 0.0
    %706 = vmatprep.subr.mxu0 0.0
    %707 = vmatpush1.xpose.msra.mxu0 0.0
    %708 = vmatprep.subr.mxu0 0.0
    %709 = vmatpush1.xpose.msra.mxu0 0.0
    %710 = vmatprep.subr.mxu0 0.0
    %711 = vmatpush1.xpose.msra.mxu0 0.0
    %712 = vmatprep.subr.mxu0 0.0
    %713 = vmatpush1.xpose.msra.mxu0 0.0
    %714 = vmatprep.subr.mxu0 0.0
    %715 = vmatpush1.xpose.msra.mxu0 0.0
    %716 = vmatprep.subr.mxu0 0.0
    %717 = vmatpush1.xpose.msra.mxu0 0.0
    %718 = vmatprep.subr.mxu0 0.0
    %719 = vmatpush1.xpose.msra.mxu0 0.0
    %720 = vmatprep.subr.mxu0 0.0
    %721 = vmatpush1.xpose.msra.mxu0 %v542
    %722 = vmatprep.subr.mxu0 0.0
    %723 = vmatpush2.xpose.msra.mxu0 0.0
    %724 = vmatprep.subr.mxu0 0.0
    %725 = vmatpush2.xpose.msra.mxu0 0.0
    %726 = vmatprep.subr.mxu0 0.0
    %727 = vmatpush2.xpose.msra.mxu0 0.0
    %728 = vmatprep.subr.mxu0 0.0
    %729 = vmatpush2.xpose.msra.mxu0 0.0
    %730 = vmatprep.subr.mxu0 0.0
    %731 = vmatpush2.xpose.msra.mxu0 0.0
    %732 = vmatprep.subr.mxu0 0.0
    %733 = vmatpush2.xpose.msra.mxu0 0.0
    %734 = vmatprep.subr.mxu0 0.0
    %735 = vmatpush2.xpose.msra.mxu0 0.0
    %736 = vmatprep.subr.mxu0 0.0
    %737 = vmatpush2.xpose.msra.mxu0 0.0
    %738 = vmatprep.subr.mxu0 0.0
    %739 = vmatpush2.xpose.msra.mxu0 0.0
    %740 = vmatprep.subr.mxu0 0.0
    %741 = vmatpush2.xpose.msra.mxu0 0.0
    %742 = vmatprep.subr.mxu0 0.0
    %743 = vmatpush2.xpose.msra.mxu0 0.0
    %744 = vmatprep.subr.mxu0 0.0
    %745 = vmatpush2.xpose.msra.mxu0 0.0
    %746 = vmatprep.subr.mxu0 0.0
    %747 = vmatpush2.xpose.msra.mxu0 0.0
    %748 = vmatprep.subr.mxu0 0.0
    %749 = vmatpush2.xpose.msra.mxu0 0.0
    %750 = vmatprep.subr.mxu0 0.0
    %751 = vmatpush2.xpose.msra.mxu0 0.0
    %752 = vmatprep.subr.mxu0 0.0
    %753 = vmatpush2.xpose.msra.mxu0 0.0
    %754 = vmatprep.mubr.f32.mxu0 0.0
    %755 = vmatmul.mubr.f32.gmra.mxu0 %v688
    %v756 = vpop.f32.mrf.mxu0
    %v757 = vadd.f32 0.0, %v756
    %v758 = vpop.f32.mrf.mxu0
    %759 = vdwg.mxu0
    %v761 = vsel %vm72, %v218, 0
    %763 = vmatprep.subr.mxu0 0.0
    %764 = vmatpush1.xpose.msra.mxu0 0.0
    %765 = vmatprep.subr.mxu0 0.0
    %766 = vmatpush1.xpose.msra.mxu0 0.0
    %767 = vmatprep.subr.mxu0 0.0
    %768 = vmatpush1.xpose.msra.mxu0 0.0
    %769 = vmatprep.subr.mxu0 0.0
    %770 = vmatpush1.xpose.msra.mxu0 0.0
    %771 = vmatprep.subr.mxu0 0.0
    %772 = vmatpush1.xpose.msra.mxu0 0.0
    %773 = vmatprep.subr.mxu0 0.0
    %774 = vmatpush1.xpose.msra.mxu0 0.0
    %775 = vmatprep.subr.mxu0 0.0
    %776 = vmatpush1.xpose.msra.mxu0 0.0
    %777 = vmatprep.subr.mxu0 0.0
    %778 = vmatpush1.xpose.msra.mxu0 0.0
    %779 = vmatprep.subr.mxu0 0.0
    %780 = vmatpush1.xpose.msra.mxu0 0.0
    %781 = vmatprep.subr.mxu0 0.0
    %782 = vmatpush1.xpose.msra.mxu0 0.0
    %783 = vmatprep.subr.mxu0 0.0
    %784 = vmatpush1.xpose.msra.mxu0 0.0
    %785 = vmatprep.subr.mxu0 0.0
    %786 = vmatpush1.xpose.msra.mxu0 0.0
    %787 = vmatprep.subr.mxu0 0.0
    %788 = vmatpush1.xpose.msra.mxu0 0.0
    %789 = vmatprep.subr.mxu0 0.0
    %790 = vmatpush1.xpose.msra.mxu0 0.0
    %791 = vmatprep.subr.mxu0 0.0
    %792 = vmatpush1.xpose.msra.mxu0 0.0
    %793 = vmatprep.subr.mxu0 0.0
    %794 = vmatpush1.xpose.msra.mxu0 %v542
    %795 = vmatprep.subr.mxu0 0.0
    %796 = vmatpush2.xpose.msra.mxu0 0.0
    %797 = vmatprep.subr.mxu0 0.0
    %798 = vmatpush2.xpose.msra.mxu0 0.0
    %799 = vmatprep.subr.mxu0 0.0
    %800 = vmatpush2.xpose.msra.mxu0 0.0
    %801 = vmatprep.subr.mxu0 0.0
    %802 = vmatpush2.xpose.msra.mxu0 0.0
    %803 = vmatprep.subr.mxu0 0.0
    %804 = vmatpush2.xpose.msra.mxu0 0.0
    %805 = vmatprep.subr.mxu0 0.0
    %806 = vmatpush2.xpose.msra.mxu0 0.0
    %807 = vmatprep.subr.mxu0 0.0
    %808 = vmatpush2.xpose.msra.mxu0 0.0
    %809 = vmatprep.subr.mxu0 0.0
    %810 = vmatpush2.xpose.msra.mxu0 0.0
    %811 = vmatprep.subr.mxu0 0.0
    %812 = vmatpush2.xpose.msra.mxu0 0.0
    %813 = vmatprep.subr.mxu0 0.0
    %814 = vmatpush2.xpose.msra.mxu0 0.0
    %815 = vmatprep.subr.mxu0 0.0
    %816 = vmatpush2.xpose.msra.mxu0 0.0
    %817 = vmatprep.subr.mxu0 0.0
    %818 = vmatpush2.xpose.msra.mxu0 0.0
    %819 = vmatprep.subr.mxu0 0.0
    %820 = vmatpush2.xpose.msra.mxu0 0.0
    %821 = vmatprep.subr.mxu0 0.0
    %822 = vmatpush2.xpose.msra.mxu0 0.0
    %823 = vmatprep.subr.mxu0 0.0
    %824 = vmatpush2.xpose.msra.mxu0 0.0
    %825 = vmatprep.subr.mxu0 0.0
    %826 = vmatpush2.xpose.msra.mxu0 0.0
    %827 = vmatprep.mubr.f32.mxu0 0.0
    %828 = vmatmul.mubr.f32.gmra.mxu0 %v761
    %v829 = vpop.f32.mrf.mxu0
    %v830 = vadd.f32 0.0, %v829
    %v831 = vpop.f32.mrf.mxu0
    %832 = vdwg.mxu0
    %v833 = vmul.f32 %v314, 0.35355338
    %v834 = vmul.f32 %v387, 0.35355338
    %v835 = vmul.f32 %v460, 0.35355338
    %v836 = vmul.f32 %v533, 0.35355338
    %v837 = vmul.f32 %v611, 0.35355338
    %v838 = vmul.f32 %v684, 0.35355338
    %v839 = vmul.f32 %v757, 0.35355338
    %v840 = vmul.f32 %v830, 0.35355338
    %vm841 = vcmask 64512
    %v842 = vsel %vm841, %v833, -inf
    %843 = vmax.xlane.f32.xlu0 %v842
    %v844 = vpop.xlane.xlu0 %843
    %v845 = vsel %vm841, %v834, -inf
    %846 = vmax.xlane.f32.xlu0 %v845
    %v847 = vpop.xlane.xlu0 %846
    %v848 = vsel %vm841, %v835, -inf
    %849 = vmax.xlane.f32.xlu0 %v848
    %v850 = vpop.xlane.xlu0 %849
    %v851 = vsel %vm841, %v836, -inf
    %852 = vmax.xlane.f32.xlu0 %v851
    %v853 = vpop.xlane.xlu0 %852
    %v854 = vsel %vm841, %v837, -inf
    %855 = vmax.xlane.f32.xlu0 %v854
    %v856 = vpop.xlane.xlu0 %855
    %v857 = vsel %vm841, %v838, -inf
    %858 = vmax.xlane.f32.xlu0 %v857
    %v859 = vpop.xlane.xlu0 %858
    %v860 = vsel %vm841, %v839, -inf
    %861 = vmax.xlane.f32.xlu0 %v860
    %v862 = vpop.xlane.xlu0 %861
    %v863 = vsel %vm841, %v840, -inf
    %864 = vmax.xlane.f32.xlu0 %v863
    %v865 = vpop.xlane.xlu0 %864
    %v866 = vsub.f32 %v833, %v844
    %v867 = vsub.f32 %v834, %v847
    %v868 = vsub.f32 %v835, %v850
    %v869 = vsub.f32 %v836, %v853
    %v870 = vsub.f32 %v837, %v856
    %v871 = vsub.f32 %v838, %v859
    %v872 = vsub.f32 %v839, %v862
    %v873 = vsub.f32 %v840, %v865
    %v874 = vmul.f32 %v866, 1.442695
    %v875 = vpow.pop %v874
    %v876 = vmul.f32 %v867, 1.442695
    %v877 = vpow.pop %v876
    %v878 = vmul.f32 %v868, 1.442695
    %v879 = vpow.pop %v878
    %v880 = vmul.f32 %v869, 1.442695
    %v881 = vpow.pop %v880
    %v882 = vmul.f32 %v870, 1.442695
    %v883 = vpow.pop %v882
    %v884 = vmul.f32 %v871, 1.442695
    %v885 = vpow.pop %v884
    %v886 = vmul.f32 %v872, 1.442695
    %v887 = vpow.pop %v886
    %v888 = vmul.f32 %v873, 1.442695
    %v889 = vpow.pop %v888
    %v890 = vsel %vm841, %v875, 0.0
    %891 = vadd.xlane.f32.xlu0 %v890
    %v892 = vpop.xlane.xlu0 %891
    %v893 = vsel %vm841, %v877, 0.0
    %894 = vadd.xlane.f32.xlu0 %v893
    %v895 = vpop.xlane.xlu0 %894
    %v896 = vsel %vm841, %v879, 0.0
    %897 = vadd.xlane.f32.xlu0 %v896
    %v898 = vpop.xlane.xlu0 %897
    %v899 = vsel %vm841, %v881, 0.0
    %900 = vadd.xlane.f32.xlu0 %v899
    %v901 = vpop.xlane.xlu0 %900
    %v902 = vsel %vm841, %v883, 0.0
    %903 = vadd.xlane.f32.xlu0 %v902
    %v904 = vpop.xlane.xlu0 %903
    %v905 = vsel %vm841, %v885, 0.0
    %906 = vadd.xlane.f32.xlu0 %v905
    %v907 = vpop.xlane.xlu0 %906
    %v908 = vsel %vm841, %v887, 0.0
    %909 = vadd.xlane.f32.xlu0 %v908
    %v910 = vpop.xlane.xlu0 %909
    %v911 = vsel %vm841, %v889, 0.0
    %912 = vadd.xlane.f32.xlu0 %v911
    %v913 = vpop.xlane.xlu0 %912
    %v914 = vrcp.pop %v892
    %v915 = vrcp.pop %v895
    %v916 = vrcp.pop %v898
    %v917 = vrcp.pop %v901
    %v918 = vrcp.pop %v904
    %v919 = vrcp.pop %v907
    %v920 = vrcp.pop %v910
    %v921 = vrcp.pop %v913
    %v922 = vmul.f32 %v875, %v914
    %v923 = vmul.f32 %v877, %v915
    %v924 = vmul.f32 %v879, %v916
    %v925 = vmul.f32 %v881, %v917
    %v926 = vmul.f32 %v883, %v918
    %v927 = vmul.f32 %v885, %v919
    %v928 = vmul.f32 %v887, %v920
    %v929 = vmul.f32 %v889, %v921
    %931 = vrot.lane.b32.xlu0 %v231, 64
    %v932 = vpop.permute.xlu0 %931
    %v935 = vsel %vm841, %v922, 0
    %937 = vmatprep.subr.mxu0 0.0
    %938 = vmatpush1.msra.mxu0 0.0
    %939 = vmatprep.subr.mxu0 0.0
    %940 = vmatpush1.msra.mxu0 0.0
    %941 = vmatprep.subr.mxu0 0.0
    %942 = vmatpush1.msra.mxu0 0.0
    %943 = vmatprep.subr.mxu0 0.0
    %944 = vmatpush1.msra.mxu0 0.0
    %945 = vmatprep.subr.mxu0 0.0
    %946 = vmatpush1.msra.mxu0 0.0
    %947 = vmatprep.subr.mxu0 0.0
    %948 = vmatpush1.msra.mxu0 0.0
    %949 = vmatprep.subr.mxu0 0.0
    %950 = vmatpush1.msra.mxu0 0.0
    %951 = vmatprep.subr.mxu0 0.0
    %952 = vmatpush1.msra.mxu0 0.0
    %953 = vmatprep.subr.mxu0 0.0
    %954 = vmatpush1.msra.mxu0 0.0
    %955 = vmatprep.subr.mxu0 0.0
    %956 = vmatpush1.msra.mxu0 0.0
    %957 = vmatprep.subr.mxu0 0.0
    %958 = vmatpush1.msra.mxu0 0.0
    %959 = vmatprep.subr.mxu0 0.0
    %960 = vmatpush1.msra.mxu0 0.0
    %961 = vmatprep.subr.mxu0 0.0
    %962 = vmatpush1.msra.mxu0 0.0
    %963 = vmatprep.subr.mxu0 0.0
    %964 = vmatpush1.msra.mxu0 0.0
    %965 = vmatprep.subr.mxu0 0.0
    %966 = vmatpush1.msra.mxu0 0.0
    %967 = vmatprep.subr.mxu0 0.0
    %968 = vmatpush1.msra.mxu0 %v932
    %969 = vmatprep.subr.mxu0 0.0
    %970 = vmatpush2.msra.mxu0 0.0
    %971 = vmatprep.subr.mxu0 0.0
    %972 = vmatpush2.msra.mxu0 0.0
    %973 = vmatprep.subr.mxu0 0.0
    %974 = vmatpush2.msra.mxu0 0.0
    %975 = vmatprep.subr.mxu0 0.0
    %976 = vmatpush2.msra.mxu0 0.0
    %977 = vmatprep.subr.mxu0 0.0
    %978 = vmatpush2.msra.mxu0 0.0
    %979 = vmatprep.subr.mxu0 0.0
    %980 = vmatpush2.msra.mxu0 0.0
    %981 = vmatprep.subr.mxu0 0.0
    %982 = vmatpush2.msra.mxu0 0.0
    %983 = vmatprep.subr.mxu0 0.0
    %984 = vmatpush2.msra.mxu0 0.0
    %985 = vmatprep.subr.mxu0 0.0
    %986 = vmatpush2.msra.mxu0 0.0
    %987 = vmatprep.subr.mxu0 0.0
    %988 = vmatpush2.msra.mxu0 0.0
    %989 = vmatprep.subr.mxu0 0.0
    %990 = vmatpush2.msra.mxu0 0.0
    %991 = vmatprep.subr.mxu0 0.0
    %992 = vmatpush2.msra.mxu0 0.0
    %993 = vmatprep.subr.mxu0 0.0
    %994 = vmatpush2.msra.mxu0 0.0
    %995 = vmatprep.subr.mxu0 0.0
    %996 = vmatpush2.msra.mxu0 0.0
    %997 = vmatprep.subr.mxu0 0.0
    %998 = vmatpush2.msra.mxu0 0.0
    %999 = vmatprep.subr.mxu0 0.0
    %1000 = vmatpush2.msra.mxu0 0.0
    %1001 = vmatprep.mubr.f32.mxu0 0.0
    %1002 = vmatmul.mubr.f32.gmra.mxu0 %v935
    %v1003 = vpop.f32.mrf.mxu0
    %v1004 = vadd.f32 0.0, %v1003
    %v1005 = vpop.f32.mrf.mxu0
    %1006 = vdwg.mxu0
    %1008 = vrot.lane.b32.xlu0 %v232, 64
    %v1009 = vpop.permute.xlu0 %1008
    %v1012 = vsel %vm841, %v923, 0
    %1014 = vmatprep.subr.mxu0 0.0
    %1015 = vmatpush1.msra.mxu0 0.0
    %1016 = vmatprep.subr.mxu0 0.0
    %1017 = vmatpush1.msra.mxu0 0.0
    %1018 = vmatprep.subr.mxu0 0.0
    %1019 = vmatpush1.msra.mxu0 0.0
    %1020 = vmatprep.subr.mxu0 0.0
    %1021 = vmatpush1.msra.mxu0 0.0
    %1022 = vmatprep.subr.mxu0 0.0
    %1023 = vmatpush1.msra.mxu0 0.0
    %1024 = vmatprep.subr.mxu0 0.0
    %1025 = vmatpush1.msra.mxu0 0.0
    %1026 = vmatprep.subr.mxu0 0.0
    %1027 = vmatpush1.msra.mxu0 0.0
    %1028 = vmatprep.subr.mxu0 0.0
    %1029 = vmatpush1.msra.mxu0 0.0
    %1030 = vmatprep.subr.mxu0 0.0
    %1031 = vmatpush1.msra.mxu0 0.0
    %1032 = vmatprep.subr.mxu0 0.0
    %1033 = vmatpush1.msra.mxu0 0.0
    %1034 = vmatprep.subr.mxu0 0.0
    %1035 = vmatpush1.msra.mxu0 0.0
    %1036 = vmatprep.subr.mxu0 0.0
    %1037 = vmatpush1.msra.mxu0 0.0
    %1038 = vmatprep.subr.mxu0 0.0
    %1039 = vmatpush1.msra.mxu0 0.0
    %1040 = vmatprep.subr.mxu0 0.0
    %1041 = vmatpush1.msra.mxu0 0.0
    %1042 = vmatprep.subr.mxu0 0.0
    %1043 = vmatpush1.msra.mxu0 0.0
    %1044 = vmatprep.subr.mxu0 0.0
    %1045 = vmatpush1.msra.mxu0 %v1009
    %1046 = vmatprep.subr.mxu0 0.0
    %1047 = vmatpush2.msra.mxu0 0.0
    %1048 = vmatprep.subr.mxu0 0.0
    %1049 = vmatpush2.msra.mxu0 0.0
    %1050 = vmatprep.subr.mxu0 0.0
    %1051 = vmatpush2.msra.mxu0 0.0
    %1052 = vmatprep.subr.mxu0 0.0
    %1053 = vmatpush2.msra.mxu0 0.0
    %1054 = vmatprep.subr.mxu0 0.0
    %1055 = vmatpush2.msra.mxu0 0.0
    %1056 = vmatprep.subr.mxu0 0.0
    %1057 = vmatpush2.msra.mxu0 0.0
    %1058 = vmatprep.subr.mxu0 0.0
    %1059 = vmatpush2.msra.mxu0 0.0
    %1060 = vmatprep.subr.mxu0 0.0
    %1061 = vmatpush2.msra.mxu0 0.0
    %1062 = vmatprep.subr.mxu0 0.0
    %1063 = vmatpush2.msra.mxu0 0.0
    %1064 = vmatprep.subr.mxu0 0.0
    %1065 = vmatpush2.msra.mxu0 0.0
    %1066 = vmatprep.subr.mxu0 0.0
    %1067 = vmatpush2.msra.mxu0 0.0
    %1068 = vmatprep.subr.mxu0 0.0
    %1069 = vmatpush2.msra.mxu0 0.0
    %1070 = vmatprep.subr.mxu0 0.0
    %1071 = vmatpush2.msra.mxu0 0.0
    %1072 = vmatprep.subr.mxu0 0.0
    %1073 = vmatpush2.msra.mxu0 0.0
    %1074 = vmatprep.subr.mxu0 0.0
    %1075 = vmatpush2.msra.mxu0 0.0
    %1076 = vmatprep.subr.mxu0 0.0
    %1077 = vmatpush2.msra.mxu0 0.0
    %1078 = vmatprep.mubr.f32.mxu0 0.0
    %1079 = vmatmul.mubr.f32.gmra.mxu0 %v1012
    %v1080 = vpop.f32.mrf.mxu0
    %v1081 = vadd.f32 0.0, %v1080
    %v1082 = vpop.f32.mrf.mxu0
    %1083 = vdwg.mxu0
    %1085 = vrot.lane.b32.xlu0 %v233, 64
    %v1086 = vpop.permute.xlu0 %1085
    %v1089 = vsel %vm841, %v924, 0
    %1091 = vmatprep.subr.mxu0 0.0
    %1092 = vmatpush1.msra.mxu0 0.0
    %1093 = vmatprep.subr.mxu0 0.0
    %1094 = vmatpush1.msra.mxu0 0.0
    %1095 = vmatprep.subr.mxu0 0.0
    %1096 = vmatpush1.msra.mxu0 0.0
    %1097 = vmatprep.subr.mxu0 0.0
    %1098 = vmatpush1.msra.mxu0 0.0
    %1099 = vmatprep.subr.mxu0 0.0
    %1100 = vmatpush1.msra.mxu0 0.0
    %1101 = vmatprep.subr.mxu0 0.0
    %1102 = vmatpush1.msra.mxu0 0.0
    %1103 = vmatprep.subr.mxu0 0.0
    %1104 = vmatpush1.msra.mxu0 0.0
    %1105 = vmatprep.subr.mxu0 0.0
    %1106 = vmatpush1.msra.mxu0 0.0
    %1107 = vmatprep.subr.mxu0 0.0
    %1108 = vmatpush1.msra.mxu0 0.0
    %1109 = vmatprep.subr.mxu0 0.0
    %1110 = vmatpush1.msra.mxu0 0.0
    %1111 = vmatprep.subr.mxu0 0.0
    %1112 = vmatpush1.msra.mxu0 0.0
    %1113 = vmatprep.subr.mxu0 0.0
    %1114 = vmatpush1.msra.mxu0 0.0
    %1115 = vmatprep.subr.mxu0 0.0
    %1116 = vmatpush1.msra.mxu0 0.0
    %1117 = vmatprep.subr.mxu0 0.0
    %1118 = vmatpush1.msra.mxu0 0.0
    %1119 = vmatprep.subr.mxu0 0.0
    %1120 = vmatpush1.msra.mxu0 0.0
    %1121 = vmatprep.subr.mxu0 0.0
    %1122 = vmatpush1.msra.mxu0 %v1086
    %1123 = vmatprep.subr.mxu0 0.0
    %1124 = vmatpush2.msra.mxu0 0.0
    %1125 = vmatprep.subr.mxu0 0.0
    %1126 = vmatpush2.msra.mxu0 0.0
    %1127 = vmatprep.subr.mxu0 0.0
    %1128 = vmatpush2.msra.mxu0 0.0
    %1129 = vmatprep.subr.mxu0 0.0
    %1130 = vmatpush2.msra.mxu0 0.0
    %1131 = vmatprep.subr.mxu0 0.0
    %1132 = vmatpush2.msra.mxu0 0.0
    %1133 = vmatprep.subr.mxu0 0.0
    %1134 = vmatpush2.msra.mxu0 0.0
    %1135 = vmatprep.subr.mxu0 0.0
    %1136 = vmatpush2.msra.mxu0 0.0
    %1137 = vmatprep.subr.mxu0 0.0
    %1138 = vmatpush2.msra.mxu0 0.0
    %1139 = vmatprep.subr.mxu0 0.0
    %1140 = vmatpush2.msra.mxu0 0.0
    %1141 = vmatprep.subr.mxu0 0.0
    %1142 = vmatpush2.msra.mxu0 0.0
    %1143 = vmatprep.subr.mxu0 0.0
    %1144 = vmatpush2.msra.mxu0 0.0
    %1145 = vmatprep.subr.mxu0 0.0
    %1146 = vmatpush2.msra.mxu0 0.0
    %1147 = vmatprep.subr.mxu0 0.0
    %1148 = vmatpush2.msra.mxu0 0.0
    %1149 = vmatprep.subr.mxu0 0.0
    %1150 = vmatpush2.msra.mxu0 0.0
    %1151 = vmatprep.subr.mxu0 0.0
    %1152 = vmatpush2.msra.mxu0 0.0
    %1153 = vmatprep.subr.mxu0 0.0
    %1154 = vmatpush2.msra.mxu0 0.0
    %1155 = vmatprep.mubr.f32.mxu0 0.0
    %1156 = vmatmul.mubr.f32.gmra.mxu0 %v1089
    %v1157 = vpop.f32.mrf.mxu0
    %v1158 = vadd.f32 0.0, %v1157
    %v1159 = vpop.f32.mrf.mxu0
    %1160 = vdwg.mxu0
    %1162 = vrot.lane.b32.xlu0 %v234, 64
    %v1163 = vpop.permute.xlu0 %1162
    %v1166 = vsel %vm841, %v925, 0
    %1168 = vmatprep.subr.mxu0 0.0
    %1169 = vmatpush1.msra.mxu0 0.0
    %1170 = vmatprep.subr.mxu0 0.0
    %1171 = vmatpush1.msra.mxu0 0.0
    %1172 = vmatprep.subr.mxu0 0.0
    %1173 = vmatpush1.msra.mxu0 0.0
    %1174 = vmatprep.subr.mxu0 0.0
    %1175 = vmatpush1.msra.mxu0 0.0
    %1176 = vmatprep.subr.mxu0 0.0
    %1177 = vmatpush1.msra.mxu0 0.0
    %1178 = vmatprep.subr.mxu0 0.0
    %1179 = vmatpush1.msra.mxu0 0.0
    %1180 = vmatprep.subr.mxu0 0.0
    %1181 = vmatpush1.msra.mxu0 0.0
    %1182 = vmatprep.subr.mxu0 0.0
    %1183 = vmatpush1.msra.mxu0 0.0
    %1184 = vmatprep.subr.mxu0 0.0
    %1185 = vmatpush1.msra.mxu0 0.0
    %1186 = vmatprep.subr.mxu0 0.0
    %1187 = vmatpush1.msra.mxu0 0.0
    %1188 = vmatprep.subr.mxu0 0.0
    %1189 = vmatpush1.msra.mxu0 0.0
    %1190 = vmatprep.subr.mxu0 0.0
    %1191 = vmatpush1.msra.mxu0 0.0
    %1192 = vmatprep.subr.mxu0 0.0
    %1193 = vmatpush1.msra.mxu0 0.0
    %1194 = vmatprep.subr.mxu0 0.0
    %1195 = vmatpush1.msra.mxu0 0.0
    %1196 = vmatprep.subr.mxu0 0.0
    %1197 = vmatpush1.msra.mxu0 0.0
    %1198 = vmatprep.subr.mxu0 0.0
    %1199 = vmatpush1.msra.mxu0 %v1163
    %1200 = vmatprep.subr.mxu0 0.0
    %1201 = vmatpush2.msra.mxu0 0.0
    %1202 = vmatprep.subr.mxu0 0.0
    %1203 = vmatpush2.msra.mxu0 0.0
    %1204 = vmatprep.subr.mxu0 0.0
    %1205 = vmatpush2.msra.mxu0 0.0
    %1206 = vmatprep.subr.mxu0 0.0
    %1207 = vmatpush2.msra.mxu0 0.0
    %1208 = vmatprep.subr.mxu0 0.0
    %1209 = vmatpush2.msra.mxu0 0.0
    %1210 = vmatprep.subr.mxu0 0.0
    %1211 = vmatpush2.msra.mxu0 0.0
    %1212 = vmatprep.subr.mxu0 0.0
    %1213 = vmatpush2.msra.mxu0 0.0
    %1214 = vmatprep.subr.mxu0 0.0
    %1215 = vmatpush2.msra.mxu0 0.0
    %1216 = vmatprep.subr.mxu0 0.0
    %1217 = vmatpush2.msra.mxu0 0.0
    %1218 = vmatprep.subr.mxu0 0.0
    %1219 = vmatpush2.msra.mxu0 0.0
    %1220 = vmatprep.subr.mxu0 0.0
    %1221 = vmatpush2.msra.mxu0 0.0
    %1222 = vmatprep.subr.mxu0 0.0
    %1223 = vmatpush2.msra.mxu0 0.0
    %1224 = vmatprep.subr.mxu0 0.0
    %1225 = vmatpush2.msra.mxu0 0.0
    %1226 = vmatprep.subr.mxu0 0.0
    %1227 = vmatpush2.msra.mxu0 0.0
    %1228 = vmatprep.subr.mxu0 0.0
    %1229 = vmatpush2.msra.mxu0 0.0
    %1230 = vmatprep.subr.mxu0 0.0
    %1231 = vmatpush2.msra.mxu0 0.0
    %1232 = vmatprep.mubr.f32.mxu0 0.0
    %1233 = vmatmul.mubr.f32.gmra.mxu0 %v1166
    %v1234 = vpop.f32.mrf.mxu0
    %v1235 = vadd.f32 0.0, %v1234
    %v1236 = vpop.f32.mrf.mxu0
    %1237 = vdwg.mxu0
    %1239 = vrot.lane.b32.xlu0 %v235, 64
    %v1240 = vpop.permute.xlu0 %1239
    %v1243 = vsel %vm841, %v926, 0
    %1245 = vmatprep.subr.mxu0 0.0
    %1246 = vmatpush1.msra.mxu0 0.0
    %1247 = vmatprep.subr.mxu0 0.0
    %1248 = vmatpush1.msra.mxu0 0.0
    %1249 = vmatprep.subr.mxu0 0.0
    %1250 = vmatpush1.msra.mxu0 0.0
    %1251 = vmatprep.subr.mxu0 0.0
    %1252 = vmatpush1.msra.mxu0 0.0
    %1253 = vmatprep.subr.mxu0 0.0
    %1254 = vmatpush1.msra.mxu0 0.0
    %1255 = vmatprep.subr.mxu0 0.0
    %1256 = vmatpush1.msra.mxu0 0.0
    %1257 = vmatprep.subr.mxu0 0.0
    %1258 = vmatpush1.msra.mxu0 0.0
    %1259 = vmatprep.subr.mxu0 0.0
    %1260 = vmatpush1.msra.mxu0 0.0
    %1261 = vmatprep.subr.mxu0 0.0
    %1262 = vmatpush1.msra.mxu0 0.0
    %1263 = vmatprep.subr.mxu0 0.0
    %1264 = vmatpush1.msra.mxu0 0.0
    %1265 = vmatprep.subr.mxu0 0.0
    %1266 = vmatpush1.msra.mxu0 0.0
    %1267 = vmatprep.subr.mxu0 0.0
    %1268 = vmatpush1.msra.mxu0 0.0
    %1269 = vmatprep.subr.mxu0 0.0
    %1270 = vmatpush1.msra.mxu0 0.0
    %1271 = vmatprep.subr.mxu0 0.0
    %1272 = vmatpush1.msra.mxu0 0.0
    %1273 = vmatprep.subr.mxu0 0.0
    %1274 = vmatpush1.msra.mxu0 0.0
    %1275 = vmatprep.subr.mxu0 0.0
    %1276 = vmatpush1.msra.mxu0 %v1240
    %1277 = vmatprep.subr.mxu0 0.0
    %1278 = vmatpush2.msra.mxu0 0.0
    %1279 = vmatprep.subr.mxu0 0.0
    %1280 = vmatpush2.msra.mxu0 0.0
    %1281 = vmatprep.subr.mxu0 0.0
    %1282 = vmatpush2.msra.mxu0 0.0
    %1283 = vmatprep.subr.mxu0 0.0
    %1284 = vmatpush2.msra.mxu0 0.0
    %1285 = vmatprep.subr.mxu0 0.0
    %1286 = vmatpush2.msra.mxu0 0.0
    %1287 = vmatprep.subr.mxu0 0.0
    %1288 = vmatpush2.msra.mxu0 0.0
    %1289 = vmatprep.subr.mxu0 0.0
    %1290 = vmatpush2.msra.mxu0 0.0
    %1291 = vmatprep.subr.mxu0 0.0
    %1292 = vmatpush2.msra.mxu0 0.0
    %1293 = vmatprep.subr.mxu0 0.0
    %1294 = vmatpush2.msra.mxu0 0.0
    %1295 = vmatprep.subr.mxu0 0.0
    %1296 = vmatpush2.msra.mxu0 0.0
    %1297 = vmatprep.subr.mxu0 0.0
    %1298 = vmatpush2.msra.mxu0 0.0
    %1299 = vmatprep.subr.mxu0 0.0
    %1300 = vmatpush2.msra.mxu0 0.0
    %1301 = vmatprep.subr.mxu0 0.0
    %1302 = vmatpush2.msra.mxu0 0.0
    %1303 = vmatprep.subr.mxu0 0.0
    %1304 = vmatpush2.msra.mxu0 0.0
    %1305 = vmatprep.subr.mxu0 0.0
    %1306 = vmatpush2.msra.mxu0 0.0
    %1307 = vmatprep.subr.mxu0 0.0
    %1308 = vmatpush2.msra.mxu0 0.0
    %1309 = vmatprep.mubr.f32.mxu0 0.0
    %1310 = vmatmul.mubr.f32.gmra.mxu0 %v1243
    %v1311 = vpop.f32.mrf.mxu0
    %v1312 = vadd.f32 0.0, %v1311
    %v1313 = vpop.f32.mrf.mxu0
    %1314 = vdwg.mxu0
    %1316 = vrot.lane.b32.xlu0 %v236, 64
    %v1317 = vpop.permute.xlu0 %1316
    %v1320 = vsel %vm841, %v927, 0
    %1322 = vmatprep.subr.mxu0 0.0
    %1323 = vmatpush1.msra.mxu0 0.0
    %1324 = vmatprep.subr.mxu0 0.0
    %1325 = vmatpush1.msra.mxu0 0.0
    %1326 = vmatprep.subr.mxu0 0.0
    %1327 = vmatpush1.msra.mxu0 0.0
    %1328 = vmatprep.subr.mxu0 0.0
    %1329 = vmatpush1.msra.mxu0 0.0
    %1330 = vmatprep.subr.mxu0 0.0
    %1331 = vmatpush1.msra.mxu0 0.0
    %1332 = vmatprep.subr.mxu0 0.0
    %1333 = vmatpush1.msra.mxu0 0.0
    %1334 = vmatprep.subr.mxu0 0.0
    %1335 = vmatpush1.msra.mxu0 0.0
    %1336 = vmatprep.subr.mxu0 0.0
    %1337 = vmatpush1.msra.mxu0 0.0
    %1338 = vmatprep.subr.mxu0 0.0
    %1339 = vmatpush1.msra.mxu0 0.0
    %1340 = vmatprep.subr.mxu0 0.0
    %1341 = vmatpush1.msra.mxu0 0.0
    %1342 = vmatprep.subr.mxu0 0.0
    %1343 = vmatpush1.msra.mxu0 0.0
    %1344 = vmatprep.subr.mxu0 0.0
    %1345 = vmatpush1.msra.mxu0 0.0
    %1346 = vmatprep.subr.mxu0 0.0
    %1347 = vmatpush1.msra.mxu0 0.0
    %1348 = vmatprep.subr.mxu0 0.0
    %1349 = vmatpush1.msra.mxu0 0.0
    %1350 = vmatprep.subr.mxu0 0.0
    %1351 = vmatpush1.msra.mxu0 0.0
    %1352 = vmatprep.subr.mxu0 0.0
    %1353 = vmatpush1.msra.mxu0 %v1317
    %1354 = vmatprep.subr.mxu0 0.0
    %1355 = vmatpush2.msra.mxu0 0.0
    %1356 = vmatprep.subr.mxu0 0.0
    %1357 = vmatpush2.msra.mxu0 0.0
    %1358 = vmatprep.subr.mxu0 0.0
    %1359 = vmatpush2.msra.mxu0 0.0
    %1360 = vmatprep.subr.mxu0 0.0
    %1361 = vmatpush2.msra.mxu0 0.0
    %1362 = vmatprep.subr.mxu0 0.0
    %1363 = vmatpush2.msra.mxu0 0.0
    %1364 = vmatprep.subr.mxu0 0.0
    %1365 = vmatpush2.msra.mxu0 0.0
    %1366 = vmatprep.subr.mxu0 0.0
    %1367 = vmatpush2.msra.mxu0 0.0
    %1368 = vmatprep.subr.mxu0 0.0
    %1369 = vmatpush2.msra.mxu0 0.0
    %1370 = vmatprep.subr.mxu0 0.0
    %1371 = vmatpush2.msra.mxu0 0.0
    %1372 = vmatprep.subr.mxu0 0.0
    %1373 = vmatpush2.msra.mxu0 0.0
    %1374 = vmatprep.subr.mxu0 0.0
    %1375 = vmatpush2.msra.mxu0 0.0
    %1376 = vmatprep.subr.mxu0 0.0
    %1377 = vmatpush2.msra.mxu0 0.0
    %1378 = vmatprep.subr.mxu0 0.0
    %1379 = vmatpush2.msra.mxu0 0.0
    %1380 = vmatprep.subr.mxu0 0.0
    %1381 = vmatpush2.msra.mxu0 0.0
    %1382 = vmatprep.subr.mxu0 0.0
    %1383 = vmatpush2.msra.mxu0 0.0
    %1384 = vmatprep.subr.mxu0 0.0
    %1385 = vmatpush2.msra.mxu0 0.0
    %1386 = vmatprep.mubr.f32.mxu0 0.0
    %1387 = vmatmul.mubr.f32.gmra.mxu0 %v1320
    %v1388 = vpop.f32.mrf.mxu0
    %v1389 = vadd.f32 0.0, %v1388
    %v1390 = vpop.f32.mrf.mxu0
    %1391 = vdwg.mxu0
    %1393 = vrot.lane.b32.xlu0 %v237, 64
    %v1394 = vpop.permute.xlu0 %1393
    %v1397 = vsel %vm841, %v928, 0
    %1399 = vmatprep.subr.mxu0 0.0
    %1400 = vmatpush1.msra.mxu0 0.0
    %1401 = vmatprep.subr.mxu0 0.0
    %1402 = vmatpush1.msra.mxu0 0.0
    %1403 = vmatprep.subr.mxu0 0.0
    %1404 = vmatpush1.msra.mxu0 0.0
    %1405 = vmatprep.subr.mxu0 0.0
    %1406 = vmatpush1.msra.mxu0 0.0
    %1407 = vmatprep.subr.mxu0 0.0
    %1408 = vmatpush1.msra.mxu0 0.0
    %1409 = vmatprep.subr.mxu0 0.0
    %1410 = vmatpush1.msra.mxu0 0.0
    %1411 = vmatprep.subr.mxu0 0.0
    %1412 = vmatpush1.msra.mxu0 0.0
    %1413 = vmatprep.subr.mxu0 0.0
    %1414 = vmatpush1.msra.mxu0 0.0
    %1415 = vmatprep.subr.mxu0 0.0
    %1416 = vmatpush1.msra.mxu0 0.0
    %1417 = vmatprep.subr.mxu0 0.0
    %1418 = vmatpush1.msra.mxu0 0.0
    %1419 = vmatprep.subr.mxu0 0.0
    %1420 = vmatpush1.msra.mxu0 0.0
    %1421 = vmatprep.subr.mxu0 0.0
    %1422 = vmatpush1.msra.mxu0 0.0
    %1423 = vmatprep.subr.mxu0 0.0
    %1424 = vmatpush1.msra.mxu0 0.0
    %1425 = vmatprep.subr.mxu0 0.0
    %1426 = vmatpush1.msra.mxu0 0.0
    %1427 = vmatprep.subr.mxu0 0.0
    %1428 = vmatpush1.msra.mxu0 0.0
    %1429 = vmatprep.subr.mxu0 0.0
    %1430 = vmatpush1.msra.mxu0 %v1394
    %1431 = vmatprep.subr.mxu0 0.0
    %1432 = vmatpush2.msra.mxu0 0.0
    %1433 = vmatprep.subr.mxu0 0.0
    %1434 = vmatpush2.msra.mxu0 0.0
    %1435 = vmatprep.subr.mxu0 0.0
    %1436 = vmatpush2.msra.mxu0 0.0
    %1437 = vmatprep.subr.mxu0 0.0
    %1438 = vmatpush2.msra.mxu0 0.0
    %1439 = vmatprep.subr.mxu0 0.0
    %1440 = vmatpush2.msra.mxu0 0.0
    %1441 = vmatprep.subr.mxu0 0.0
    %1442 = vmatpush2.msra.mxu0 0.0
    %1443 = vmatprep.subr.mxu0 0.0
    %1444 = vmatpush2.msra.mxu0 0.0
    %1445 = vmatprep.subr.mxu0 0.0
    %1446 = vmatpush2.msra.mxu0 0.0
    %1447 = vmatprep.subr.mxu0 0.0
    %1448 = vmatpush2.msra.mxu0 0.0
    %1449 = vmatprep.subr.mxu0 0.0
    %1450 = vmatpush2.msra.mxu0 0.0
    %1451 = vmatprep.subr.mxu0 0.0
    %1452 = vmatpush2.msra.mxu0 0.0
    %1453 = vmatprep.subr.mxu0 0.0
    %1454 = vmatpush2.msra.mxu0 0.0
    %1455 = vmatprep.subr.mxu0 0.0
    %1456 = vmatpush2.msra.mxu0 0.0
    %1457 = vmatprep.subr.mxu0 0.0
    %1458 = vmatpush2.msra.mxu0 0.0
    %1459 = vmatprep.subr.mxu0 0.0
    %1460 = vmatpush2.msra.mxu0 0.0
    %1461 = vmatprep.subr.mxu0 0.0
    %1462 = vmatpush2.msra.mxu0 0.0
    %1463 = vmatprep.mubr.f32.mxu0 0.0
    %1464 = vmatmul.mubr.f32.gmra.mxu0 %v1397
    %v1465 = vpop.f32.mrf.mxu0
    %v1466 = vadd.f32 0.0, %v1465
    %v1467 = vpop.f32.mrf.mxu0
    %1468 = vdwg.mxu0
    %1470 = vrot.lane.b32.xlu0 %v238, 64
    %v1471 = vpop.permute.xlu0 %1470
    %v1474 = vsel %vm841, %v929, 0
    %1476 = vmatprep.subr.mxu0 0.0
    %1477 = vmatpush1.msra.mxu0 0.0
    %1478 = vmatprep.subr.mxu0 0.0
    %1479 = vmatpush1.msra.mxu0 0.0
    %1480 = vmatprep.subr.mxu0 0.0
    %1481 = vmatpush1.msra.mxu0 0.0
    %1482 = vmatprep.subr.mxu0 0.0
    %1483 = vmatpush1.msra.mxu0 0.0
    %1484 = vmatprep.subr.mxu0 0.0
    %1485 = vmatpush1.msra.mxu0 0.0
    %1486 = vmatprep.subr.mxu0 0.0
    %1487 = vmatpush1.msra.mxu0 0.0
    %1488 = vmatprep.subr.mxu0 0.0
    %1489 = vmatpush1.msra.mxu0 0.0
    %1490 = vmatprep.subr.mxu0 0.0
    %1491 = vmatpush1.msra.mxu0 0.0
    %1492 = vmatprep.subr.mxu0 0.0
    %1493 = vmatpush1.msra.mxu0 0.0
    %1494 = vmatprep.subr.mxu0 0.0
    %1495 = vmatpush1.msra.mxu0 0.0
    %1496 = vmatprep.subr.mxu0 0.0
    %1497 = vmatpush1.msra.mxu0 0.0
    %1498 = vmatprep.subr.mxu0 0.0
    %1499 = vmatpush1.msra.mxu0 0.0
    %1500 = vmatprep.subr.mxu0 0.0
    %1501 = vmatpush1.msra.mxu0 0.0
    %1502 = vmatprep.subr.mxu0 0.0
    %1503 = vmatpush1.msra.mxu0 0.0
    %1504 = vmatprep.subr.mxu0 0.0
    %1505 = vmatpush1.msra.mxu0 0.0
    %1506 = vmatprep.subr.mxu0 0.0
    %1507 = vmatpush1.msra.mxu0 %v1471
    %1508 = vmatprep.subr.mxu0 0.0
    %1509 = vmatpush2.msra.mxu0 0.0
    %1510 = vmatprep.subr.mxu0 0.0
    %1511 = vmatpush2.msra.mxu0 0.0
    %1512 = vmatprep.subr.mxu0 0.0
    %1513 = vmatpush2.msra.mxu0 0.0
    %1514 = vmatprep.subr.mxu0 0.0
    %1515 = vmatpush2.msra.mxu0 0.0
    %1516 = vmatprep.subr.mxu0 0.0
    %1517 = vmatpush2.msra.mxu0 0.0
    %1518 = vmatprep.subr.mxu0 0.0
    %1519 = vmatpush2.msra.mxu0 0.0
    %1520 = vmatprep.subr.mxu0 0.0
    %1521 = vmatpush2.msra.mxu0 0.0
    %1522 = vmatprep.subr.mxu0 0.0
    %1523 = vmatpush2.msra.mxu0 0.0
    %1524 = vmatprep.subr.mxu0 0.0
    %1525 = vmatpush2.msra.mxu0 0.0
    %1526 = vmatprep.subr.mxu0 0.0
    %1527 = vmatpush2.msra.mxu0 0.0
    %1528 = vmatprep.subr.mxu0 0.0
    %1529 = vmatpush2.msra.mxu0 0.0
    %1530 = vmatprep.subr.mxu0 0.0
    %1531 = vmatpush2.msra.mxu0 0.0
    %1532 = vmatprep.subr.mxu0 0.0
    %1533 = vmatpush2.msra.mxu0 0.0
    %1534 = vmatprep.subr.mxu0 0.0
    %1535 = vmatpush2.msra.mxu0 0.0
    %1536 = vmatprep.subr.mxu0 0.0
    %1537 = vmatpush2.msra.mxu0 0.0
    %1538 = vmatprep.subr.mxu0 0.0
    %1539 = vmatpush2.msra.mxu0 0.0
    %1540 = vmatprep.mubr.f32.mxu0 0.0
    %1541 = vmatmul.mubr.f32.gmra.mxu0 %v1474
    %v1542 = vpop.f32.mrf.mxu0
    %v1543 = vadd.f32 0.0, %v1542
    %v1544 = vpop.f32.mrf.mxu0
    %1545 = vdwg.mxu0
    %v1546 = vsel %vm72, %v1004, 0.0
    %v1547 = vsel %vm72, %v1081, 0.0
    %v1548 = vadd.f32 %v1546, %v1547
    %v1549 = vsel %vm72, %v1158, 0.0
    %v1550 = vadd.f32 %v1548, %v1549
    %v1551 = vsel %vm72, %v1235, 0.0
    %v1552 = vadd.f32 %v1550, %v1551
    %v1553 = vsel %vm72, %v1312, 0.0
    %v1554 = vsel %vm72, %v1389, 0.0
    %v1555 = vadd.f32 %v1553, %v1554
    %v1556 = vsel %vm72, %v1466, 0.0
    %v1557 = vadd.f32 %v1555, %v1556
    %v1558 = vsel %vm72, %v1543, 0.0
    %v1559 = vadd.f32 %v1557, %v1558
    %v1560 = vld [vmem:[%s3] sm:$0xff]
    %v1561 = vld [vmem:[%s3 + $0x8] sm:$0xff]
    %v1562 = vld [vmem:[%s3 + $0x10] sm:$0xff]
    %v1563 = vld [vmem:[%s3 + $0x18] sm:$0xff]
    %v1564 = vld [vmem:[%s4] sm:$0x1]
    %v1566 = vlaneseq
    %v1567 = vshrl.u32 %v1566, 7
    %v1568 = vsub.s32 0, %v1567
    %v1569 = vrot.slane %v1564, %v1568
    %v1572 = vsel %vm72, %v1552, 0
    %v1575 = vsel %vm72, %v1559, 0
    %1577 = vmatprep.subr.mxu0 0.0
    %1578 = vmatpush1.msra.mxu0 0.0
    %1579 = vmatprep.subr.mxu0 0.0
    %1580 = vmatpush1.msra.mxu0 0.0
    %1581 = vmatprep.subr.mxu0 0.0
    %1582 = vmatpush1.msra.mxu0 0.0
    %1583 = vmatprep.subr.mxu0 0.0
    %1584 = vmatpush1.msra.mxu0 0.0
    %1585 = vmatprep.subr.mxu0 0.0
    %1586 = vmatpush1.msra.mxu0 0.0
    %1587 = vmatprep.subr.mxu0 0.0
    %1588 = vmatpush1.msra.mxu0 0.0
    %1589 = vmatprep.subr.mxu0 0.0
    %1590 = vmatpush1.msra.mxu0 0.0
    %1591 = vmatprep.subr.mxu0 0.0
    %1592 = vmatpush1.msra.mxu0 0.0
    %1593 = vmatprep.subr.mxu0 0.0
    %1594 = vmatpush1.msra.mxu0 0.0
    %1595 = vmatprep.subr.mxu0 0.0
    %1596 = vmatpush1.msra.mxu0 0.0
    %1597 = vmatprep.subr.mxu0 0.0
    %1598 = vmatpush1.msra.mxu0 0.0
    %1599 = vmatprep.subr.mxu0 0.0
    %1600 = vmatpush1.msra.mxu0 0.0
    %1601 = vmatprep.subr.mxu0 0.0
    %1602 = vmatpush1.msra.mxu0 %v1563
    %1603 = vmatprep.subr.mxu0 0.0
    %1604 = vmatpush1.msra.mxu0 %v1562
    %1605 = vmatprep.subr.mxu0 0.0
    %1606 = vmatpush1.msra.mxu0 %v1561
    %1607 = vmatprep.subr.mxu0 0.0
    %1608 = vmatpush1.msra.mxu0 %v1560
    %1609 = vmatprep.subr.mxu0 0.0
    %1610 = vmatpush2.msra.mxu0 0.0
    %1611 = vmatprep.subr.mxu0 0.0
    %1612 = vmatpush2.msra.mxu0 0.0
    %1613 = vmatprep.subr.mxu0 0.0
    %1614 = vmatpush2.msra.mxu0 0.0
    %1615 = vmatprep.subr.mxu0 0.0
    %1616 = vmatpush2.msra.mxu0 0.0
    %1617 = vmatprep.subr.mxu0 0.0
    %1618 = vmatpush2.msra.mxu0 0.0
    %1619 = vmatprep.subr.mxu0 0.0
    %1620 = vmatpush2.msra.mxu0 0.0
    %1621 = vmatprep.subr.mxu0 0.0
    %1622 = vmatpush2.msra.mxu0 0.0
    %1623 = vmatprep.subr.mxu0 0.0
    %1624 = vmatpush2.msra.mxu0 0.0
    %1625 = vmatprep.subr.mxu0 0.0
    %1626 = vmatpush2.msra.mxu0 0.0
    %1627 = vmatprep.subr.mxu0 0.0
    %1628 = vmatpush2.msra.mxu0 0.0
    %1629 = vmatprep.subr.mxu0 0.0
    %1630 = vmatpush2.msra.mxu0 0.0
    %1631 = vmatprep.subr.mxu0 0.0
    %1632 = vmatpush2.msra.mxu0 0.0
    %1633 = vmatprep.subr.mxu0 0.0
    %1634 = vmatpush2.msra.mxu0 0.0
    %1635 = vmatprep.subr.mxu0 0.0
    %1636 = vmatpush2.msra.mxu0 0.0
    %1637 = vmatprep.subr.mxu0 0.0
    %1638 = vmatpush2.msra.mxu0 0.0
    %1639 = vmatprep.subr.mxu0 0.0
    %1640 = vmatpush2.msra.mxu0 0.0
    %1641 = vmatprep.mubr.f32.mxu0 0.0
    %1642 = vmatmul.mubr.f32.gmra.mxu0 %v1572
    %v1643 = vpop.f32.mrf.mxu0
    %v1644 = vadd.f32 %v1569, %v1643
    %v1645 = vpop.f32.mrf.mxu0
    %1646 = vmatprep.mubr.f32.mxu0 0.0
    %1647 = vmatmul.mubr.f32.gmra.mxu0 %v1575
    %v1648 = vpop.f32.mrf.mxu0
    %v1649 = vadd.f32 %v1569, %v1648
    %v1650 = vpop.f32.mrf.mxu0
    %1651 = vdwg.mxu0
    %v1652 = vadd.f32 %v59, %v1644
    %v1653 = vadd.f32 %v60, %v1649
    %v1654 = vsel %vm72, %v1652, 0.0
    %1655 = vadd.xlane.f32.xlu0 %v1654
    %v1656 = vpop.xlane.xlu0 %1655
    %v1657 = vsel %vm72, %v1653, 0.0
    %1658 = vadd.xlane.f32.xlu0 %v1657
    %v1659 = vpop.xlane.xlu0 %1658
    %v1660 = vrcp.pop 32.0
    %v1661 = vmul.f32 %v1656, %v1660
    %v1662 = vmul.f32 %v1659, %v1660
    %v1663 = vsub.f32 %v1652, %v1661
    %v1664 = vsub.f32 %v1653, %v1662
    %v1665 = vmul.f32 %v1663, %v1663
    %v1666 = vmul.f32 %v1664, %v1664
    %v1667 = vsel %vm72, %v1665, 0.0
    %1668 = vadd.xlane.f32.xlu0 %v1667
    %v1669 = vpop.xlane.xlu0 %1668
    %v1670 = vsel %vm72, %v1666, 0.0
    %1671 = vadd.xlane.f32.xlu0 %v1670
    %v1672 = vpop.xlane.xlu0 %1671
    %v1673 = vmul.f32 %v1669, %v1660
    %v1674 = vmul.f32 %v1672, %v1660
    %v1675 = vadd.f32 %v1673, 1e-05
    %v1676 = vadd.f32 %v1674, 1e-05
    %v1677 = vrsqrt.pop %v1675
    %v1678 = vrsqrt.pop %v1676
    %v1679 = vmul.f32 %v1663, %v1677
    %v1680 = vmul.f32 %v1664, %v1678
    %v1681 = vld [vmem:[%s5] sm:$0x1]
    %v1683 = vlaneseq
    %v1684 = vshrl.u32 %v1683, 7
    %v1685 = vsub.s32 0, %v1684
    %v1686 = vrot.slane %v1681, %v1685
    %v1688 = vmul.f32 %v1679, %v1686
    %v1689 = vmul.f32 %v1680, %v1686
    %v1690 = vld [vmem:[%s6] sm:$0x1]
    %v1692 = vlaneseq
    %v1693 = vshrl.u32 %v1692, 7
    %v1694 = vsub.s32 0, %v1693
    %v1695 = vrot.slane %v1690, %v1694
    %v1697 = vadd.f32 %v1688, %v1695
    %v1698 = vadd.f32 %v1689, %v1695
    %v1699 = vld [vmem:[%s7] sm:$0xff]
    %v1700 = vld [vmem:[%s7 + $0x8] sm:$0xff]
    %v1701 = vld [vmem:[%s7 + $0x10] sm:$0xff]
    %v1702 = vld [vmem:[%s7 + $0x18] sm:$0xff]
    %v1703 = vld [vmem:[%s8] sm:$0x1]
    %v1705 = vlaneseq
    %v1706 = vshrl.u32 %v1705, 7
    %v1707 = vsub.s32 0, %v1706
    %v1708 = vrot.slane %v1703, %v1707
    %v1711 = vsel %vm72, %v1697, 0
    %v1714 = vsel %vm72, %v1698, 0
    %1716 = vmatprep.subr.mxu0 0.0
    %1717 = vmatpush1.msra.mxu0 0.0
    %1718 = vmatprep.subr.mxu0 0.0
    %1719 = vmatpush1.msra.mxu0 0.0
    %1720 = vmatprep.subr.mxu0 0.0
    %1721 = vmatpush1.msra.mxu0 0.0
    %1722 = vmatprep.subr.mxu0 0.0
    %1723 = vmatpush1.msra.mxu0 0.0
    %1724 = vmatprep.subr.mxu0 0.0
    %1725 = vmatpush1.msra.mxu0 0.0
    %1726 = vmatprep.subr.mxu0 0.0
    %1727 = vmatpush1.msra.mxu0 0.0
    %1728 = vmatprep.subr.mxu0 0.0
    %1729 = vmatpush1.msra.mxu0 0.0
    %1730 = vmatprep.subr.mxu0 0.0
    %1731 = vmatpush1.msra.mxu0 0.0
    %1732 = vmatprep.subr.mxu0 0.0
    %1733 = vmatpush1.msra.mxu0 0.0
    %1734 = vmatprep.subr.mxu0 0.0
    %1735 = vmatpush1.msra.mxu0 0.0
    %1736 = vmatprep.subr.mxu0 0.0
    %1737 = vmatpush1.msra.mxu0 0.0
    %1738 = vmatprep.subr.mxu0 0.0
    %1739 = vmatpush1.msra.mxu0 0.0
    %1740 = vmatprep.subr.mxu0 0.0
    %1741 = vmatpush1.msra.mxu0 %v1702
    %1742 = vmatprep.subr.mxu0 0.0
    %1743 = vmatpush1.msra.mxu0 %v1701
    %1744 = vmatprep.subr.mxu0 0.0
    %1745 = vmatpush1.msra.mxu0 %v1700
    %1746 = vmatprep.subr.mxu0 0.0
    %1747 = vmatpush1.msra.mxu0 %v1699
    %1748 = vmatprep.subr.mxu0 0.0
    %1749 = vmatpush2.msra.mxu0 0.0
    %1750 = vmatprep.subr.mxu0 0.0
    %1751 = vmatpush2.msra.mxu0 0.0
    %1752 = vmatprep.subr.mxu0 0.0
    %1753 = vmatpush2.msra.mxu0 0.0
    %1754 = vmatprep.subr.mxu0 0.0
    %1755 = vmatpush2.msra.mxu0 0.0
    %1756 = vmatprep.subr.mxu0 0.0
    %1757 = vmatpush2.msra.mxu0 0.0
    %1758 = vmatprep.subr.mxu0 0.0
    %1759 = vmatpush2.msra.mxu0 0.0
    %1760 = vmatprep.subr.mxu0 0.0
    %1761 = vmatpush2.msra.mxu0 0.0
    %1762 = vmatprep.subr.mxu0 0.0
    %1763 = vmatpush2.msra.mxu0 0.0
    %1764 = vmatprep.subr.mxu0 0.0
    %1765 = vmatpush2.msra.mxu0 0.0
    %1766 = vmatprep.subr.mxu0 0.0
    %1767 = vmatpush2.msra.mxu0 0.0
    %1768 = vmatprep.subr.mxu0 0.0
    %1769 = vmatpush2.msra.mxu0 0.0
    %1770 = vmatprep.subr.mxu0 0.0
    %1771 = vmatpush2.msra.mxu0 0.0
    %1772 = vmatprep.subr.mxu0 0.0
    %1773 = vmatpush2.msra.mxu0 0.0
    %1774 = vmatprep.subr.mxu0 0.0
    %1775 = vmatpush2.msra.mxu0 0.0
    %1776 = vmatprep.subr.mxu0 0.0
    %1777 = vmatpush2.msra.mxu0 0.0
    %1778 = vmatprep.subr.mxu0 0.0
    %1779 = vmatpush2.msra.mxu0 0.0
    %1780 = vmatprep.mubr.f32.mxu0 0.0
    %1781 = vmatmul.mubr.f32.gmra.mxu0 %v1711
    %v1782 = vpop.f32.mrf.mxu0
    %v1783 = vadd.f32 %v1708, %v1782
    %v1784 = vpop.f32.mrf.mxu0
    %1785 = vmatprep.mubr.f32.mxu0 0.0
    %1786 = vmatmul.mubr.f32.gmra.mxu0 %v1714
    %v1787 = vpop.f32.mrf.mxu0
    %v1788 = vadd.f32 %v1708, %v1787
    %v1789 = vpop.f32.mrf.mxu0
    %1790 = vdwg.mxu0
    %v1791 = vmax.f32 %v1783, 0.0
    %v1792 = vmax.f32 %v1788, 0.0
    %v1793 = vld [vmem:[%s9] sm:$0xff]
    %v1794 = vld [vmem:[%s9 + $0x8] sm:$0xff]
    %v1795 = vld [vmem:[%s9 + $0x10] sm:$0xff]
    %v1796 = vld [vmem:[%s9 + $0x18] sm:$0xff]
    %v1797 = vld [vmem:[%s9 + $0x20] sm:$0xff]
    %v1798 = vld [vmem:[%s9 + $0x28] sm:$0xff]
    %v1799 = vld [vmem:[%s9 + $0x30] sm:$0xff]
    %v1800 = vld [vmem:[%s9 + $0x38] sm:$0xff]
    %v1801 = vld [vmem:[%s10] sm:$0x1]
    %v1803 = vlaneseq
    %v1804 = vshrl.u32 %v1803, 7
    %v1805 = vsub.s32 0, %v1804
    %v1806 = vrot.slane %v1801, %v1805
    %vm1808 = vcmask 523264
    %v1810 = vsel %vm1808, %v1791, 0
    %v1813 = vsel %vm1808, %v1792, 0
    %1815 = vmatprep.subr.mxu0 0.0
    %1816 = vmatpush1.msra.mxu0 0.0
    %1817 = vmatprep.subr.mxu0 0.0
    %1818 = vmatpush1.msra.mxu0 0.0
    %1819 = vmatprep.subr.mxu0 0.0
    %1820 = vmatpush1.msra.mxu0 0.0
    %1821 = vmatprep.subr.mxu0 0.0
    %1822 = vmatpush1.msra.mxu0 0.0
    %1823 = vmatprep.subr.mxu0 0.0
    %1824 = vmatpush1.msra.mxu0 0.0
    %1825 = vmatprep.subr.mxu0 0.0
    %1826 = vmatpush1.msra.mxu0 0.0
    %1827 = vmatprep.subr.mxu0 0.0
    %1828 = vmatpush1.msra.mxu0 0.0
    %1829 = vmatprep.subr.mxu0 0.0
    %1830 = vmatpush1.msra.mxu0 0.0
    %1831 = vmatprep.subr.mxu0 0.0
    %1832 = vmatpush1.msra.mxu0 %v1800
    %1833 = vmatprep.subr.mxu0 0.0
    %1834 = vmatpush1.msra.mxu0 %v1799
    %1835 = vmatprep.subr.mxu0 0.0
    %1836 = vmatpush1.msra.mxu0 %v1798
    %1837 = vmatprep.subr.mxu0 0.0
    %1838 = vmatpush1.msra.mxu0 %v1797
    %1839 = vmatprep.subr.mxu0 0.0
    %1840 = vmatpush1.msra.mxu0 %v1796
    %1841 = vmatprep.subr.mxu0 0.0
    %1842 = vmatpush1.msra.mxu0 %v1795
    %1843 = vmatprep.subr.mxu0 0.0
    %1844 = vmatpush1.msra.mxu0 %v1794
    %1845 = vmatprep.subr.mxu0 0.0
    %1846 = vmatpush1.msra.mxu0 %v1793
    %1847 = vmatprep.subr.mxu0 0.0
    %1848 = vmatpush2.msra.mxu0 0.0
    %1849 = vmatprep.subr.mxu0 0.0
    %1850 = vmatpush2.msra.mxu0 0.0
    %1851 = vmatprep.subr.mxu0 0.0
    %1852 = vmatpush2.msra.mxu0 0.0
    %1853 = vmatprep.subr.mxu0 0.0
    %1854 = vmatpush2.msra.mxu0 0.0
    %1855 = vmatprep.subr.mxu0 0.0
    %1856 = vmatpush2.msra.mxu0 0.0
    %1857 = vmatprep.subr.mxu0 0.0
    %1858 = vmatpush2.msra.mxu0 0.0
    %1859 = vmatprep.subr.mxu0 0.0
    %1860 = vmatpush2.msra.mxu0 0.0
    %1861 = vmatprep.subr.mxu0 0.0
    %1862 = vmatpush2.msra.mxu0 0.0
    %1863 = vmatprep.subr.mxu0 0.0
    %1864 = vmatpush2.msra.mxu0 0.0
    %1865 = vmatprep.subr.mxu0 0.0
    %1866 = vmatpush2.msra.mxu0 0.0
    %1867 = vmatprep.subr.mxu0 0.0
    %1868 = vmatpush2.msra.mxu0 0.0
    %1869 = vmatprep.subr.mxu0 0.0
    %1870 = vmatpush2.msra.mxu0 0.0
    %1871 = vmatprep.subr.mxu0 0.0
    %1872 = vmatpush2.msra.mxu0 0.0
    %1873 = vmatprep.subr.mxu0 0.0
    %1874 = vmatpush2.msra.mxu0 0.0
    %1875 = vmatprep.subr.mxu0 0.0
    %1876 = vmatpush2.msra.mxu0 0.0
    %1877 = vmatprep.subr.mxu0 0.0
    %1878 = vmatpush2.msra.mxu0 0.0
    %1879 = vmatprep.mubr.f32.mxu0 0.0
    %1880 = vmatmul.mubr.f32.gmra.mxu0 %v1810
    %v1881 = vpop.f32.mrf.mxu0
    %v1882 = vadd.f32 %v1806, %v1881
    %v1883 = vpop.f32.mrf.mxu0
    %1884 = vmatprep.mubr.f32.mxu0 0.0
    %1885 = vmatmul.mubr.f32.gmra.mxu0 %v1813
    %v1886 = vpop.f32.mrf.mxu0
    %v1887 = vadd.f32 %v1806, %v1886
    %v1888 = vpop.f32.mrf.mxu0
    %1889 = vdwg.mxu0
    %v1890 = vadd.f32 %v1697, %v1882
    %v1891 = vadd.f32 %v1698, %v1887
    %v1892 = vsel %vm72, %v1890, 0.0
    %1893 = vadd.xlane.f32.xlu0 %v1892
    %v1894 = vpop.xlane.xlu0 %1893
    %v1895 = vsel %vm72, %v1891, 0.0
    %1896 = vadd.xlane.f32.xlu0 %v1895
    %v1897 = vpop.xlane.xlu0 %1896
    %v1898 = vmul.f32 %v1894, %v1660
    %v1899 = vmul.f32 %v1897, %v1660
    %v1900 = vsub.f32 %v1890, %v1898
    %v1901 = vsub.f32 %v1891, %v1899
    %v1902 = vmul.f32 %v1900, %v1900
    %v1903 = vmul.f32 %v1901, %v1901
    %v1904 = vsel %vm72, %v1902, 0.0
    %1905 = vadd.xlane.f32.xlu0 %v1904
    %v1906 = vpop.xlane.xlu0 %1905
    %v1907 = vsel %vm72, %v1903, 0.0
    %1908 = vadd.xlane.f32.xlu0 %v1907
    %v1909 = vpop.xlane.xlu0 %1908
    %v1910 = vmul.f32 %v1906, %v1660
    %v1911 = vmul.f32 %v1909, %v1660
    %v1912 = vadd.f32 %v1910, 1e-05
    %v1913 = vadd.f32 %v1911, 1e-05
    %v1914 = vrsqrt.pop %v1912
    %v1915 = vrsqrt.pop %v1913
    %v1916 = vmul.f32 %v1900, %v1914
    %v1917 = vmul.f32 %v1901, %v1915
    %v1918 = vld [vmem:[%s11] sm:$0x1]
    %v1920 = vlaneseq
    %v1921 = vshrl.u32 %v1920, 7
    %v1922 = vsub.s32 0, %v1921
    %v1923 = vrot.slane %v1918, %v1922
    %v1925 = vmul.f32 %v1916, %v1923
    %v1926 = vmul.f32 %v1917, %v1923
    %v1927 = vld [vmem:[%s12] sm:$0x1]
    %v1929 = vlaneseq
    %v1930 = vshrl.u32 %v1929, 7
    %v1931 = vsub.s32 0, %v1930
    %v1932 = vrot.slane %v1927, %v1931
    %v1934 = vadd.f32 %v1925, %v1932
    %v1935 = vadd.f32 %v1926, %v1932
    %1936 = vst.msk [vmem:[#allocation5] sm:$0xff] %vm72, %v1934
    %1937 = vst.msk [vmem:[#allocation5 + $0x8] sm:$0xff] %vm72, %v1935
    // Predicated region
    $region58: #{tpu_custom_call.1} parent=1 // pred_check
      _
    $region59: #{tpu_custom_call.1} parent=1 // pred_check_branch
      %1939 = sbr.rel (0) target = $region61
    $region60: #{tpu_custom_call.1} parent=1 // pred_region
      %s1941 = ssub.s32 256, 256
      %1942 = vsyncadd [#allocation4], %s1941
      %s1943 = sshll.u32 [#allocation5], 4
      %s1944 = int_to_ptr.vmem [resolvable:$true] %s1943
      %1949 = dma.vmem_to_hbm [thread:$0]  %s1944, 256, %s13, [#allocation4], 128, 128, 8
    $region61: #{tpu_custom_call.1} parent=1 // pred_fallthru
      _
    // Predicated region
    $region62: #{tpu_custom_call.1} parent=1 // pred_check
      _
    $region63: #{tpu_custom_call.1} parent=1 // pred_check_branch
      %1951 = sbr.rel (0) target = $region65
    $region64: #{tpu_custom_call.1} parent=1 // pred_region
      %1952 = dma.done [#allocation4], 256
    $region65: #{tpu_custom_call.1} parent=1 // pred_fallthru
      _
    %1953 = vsyncpa [#allocation3], 1
    %1954 = vsyncpa [#allocation4], 1

</llo_original>
